<compile_context>
chip_gen: v5e
topology: v5e:2x2
jax: 0.10.0
libtpu: 0.0.40
codegen_flags: <defaults>
</compile_context>

<pallas_src>
import functools

import jax
import jax.numpy as jnp
from jax.experimental import pallas as pl
from jax.experimental.pallas import tpu as pltpu

BN_EPS = 1e-5


def _basic_block_kernel(x_ref, w_ref, sb_ref, mask_ref, o_ref,
                        xpf_ref, midf_ref, stk_ref, *, H, W, NB):
    """Fused BasicBlock forward for NB images.

    x_ref   : (NB, Cin, H*W)   f32   images, channels on sublanes, H*W lanes
    w_ref   : (Cout, 2*9*Cp)   bf16  [conv1 | conv2] tap-stacked weights
    sb_ref  : (Cout, 4)        f32   packed [s1, b1, s2, b2] folded BatchNorm
    mask_ref: (1, NB*L)        f32   1.0 at interior positions of padded grid
    o_ref   : (NB, Cout, H*W)  f32
    xpf_ref : (NB, Cin, LE)    bf16  per-image zero-padded flat input
    midf_ref: (NB, Cout, LE)   bf16  per-image zero-padded flat conv1 output
    stk_ref : (9*Cp, NB*L)     bf16  tap-stacked matmul operand (shared conv1/2)
    """
    Cin = x_ref.shape[1]
    Cout = o_ref.shape[1]
    Cp = stk_ref.shape[0] // 9          # sublane-aligned channel count
    Kp = 9 * Cp
    Hp, Wp = H + 2, W + 2
    L = Hp * Wp                          # flattened padded image length
    M = Wp + 1                           # zero margin each side of the flat core
    f32 = jnp.float32
    bf16 = jnp.bfloat16

    shifts = [(ky - 1) * Wp + (kx - 1) for ky in range(3) for kx in range(3)]

    # ---- 0. zero the scratch regions that are not fully overwritten below --
    # Whole padded-input slab: a handful of dense stores, covers halo rows,
    # side pad columns and margins in one go (no masked-store storm).
    xpf_ref[...] = jnp.zeros_like(xpf_ref)
    zmargin = jnp.zeros((Cout, M), bf16)
    for b in range(NB):
        midf_ref[b, :, :M] = zmargin           # left margin
        midf_ref[b, :, M + L:] = zmargin       # right margin
    if Cp > Cin:                               # sublane-pad rows of the stack
        zpad = jnp.zeros((Cp - Cin, NB * L), bf16)
        for t in range(9):
            stk_ref[t * Cp + Cin:(t + 1) * Cp, :] = zpad

    # ---- 1. stage padded-flat input (bf16), W-wide interior row stores -----
    for b in range(NB):
        for y in range(H):
            q = M + (y + 1) * Wp + 1
            xpf_ref[b, :, q:q + W] = x_ref[b, :, y * W:(y + 1) * W].astype(bf16)

    # ---- 2. conv1 as ONE matmul: stack the 9 lane-shifted views ------------
    for t, s in enumerate(shifts):
        for b in range(NB):
            stk_ref[t * Cp:t * Cp + Cin, b * L:(b + 1) * L] = (
                xpf_ref[b, :, M + s:M + s + L])
    acc1 = jnp.dot(w_ref[:, :Kp], stk_ref[...],
                   preferred_element_type=f32)                  # (Cout, NB*L)

    # BN1 (folded) + ReLU; zero the padded ring with one multiply; stage bf16.
    s1 = sb_ref[:, 0:1]
    b1 = sb_ref[:, 1:2]
    out1 = jnp.maximum(acc1 * s1 + b1, 0.0) * mask_ref[...]
    for b in range(NB):
        midf_ref[b, :, M:M + L] = out1[:, b * L:(b + 1) * L].astype(bf16)

    # ---- 3. conv2: same tap-stacking, same stacked scratch (Cin == Cout) ---
    for t, s in enumerate(shifts):
        for b in range(NB):
            stk_ref[t * Cp:t * Cp + Cout, b * L:(b + 1) * L] = (
                midf_ref[b, :, M + s:M + s + L])
    acc2 = jnp.dot(w_ref[:, Kp:], stk_ref[...],
                   preferred_element_type=f32)                  # (Cout, NB*L)
    s2 = sb_ref[:, 2:3]
    b2 = sb_ref[:, 3:4]
    out2 = acc2 * s2 + b2

    # ---- 4. residual (f32) + ReLU, row-wise crop into the dense output -----
    for b in range(NB):
        for y in range(H):
            q0 = b * L + (y + 1) * Wp + 1
            seg = out2[:, q0:q0 + W] + x_ref[b, :, y * W:(y + 1) * W].astype(f32)
            o_ref[b, :, y * W:(y + 1) * W] = jnp.maximum(seg, 0.0).astype(o_ref.dtype)


def _pick_batch_block(n, cap=8):
    """Largest divisor of n that is <= cap, preferring to leave >= 2 grid
    steps so both v7x TensorCores get work."""
    divs = [d for d in range(1, min(n, cap) + 1) if n % d == 0]
    two_plus = [d for d in divs if n // d >= 2]
    return max(two_plus) if two_plus else max(divs)


@jax.jit
def basic_block_forward(x_nchw, params):
    """x_nchw: (N, C, H, W) float32. Returns (N, C, H, W)."""
    w1, g1, be1, m1, v1 = params["w1"], params["g1"], params["b1"], params["m1"], params["v1"]
    w2, g2, be2, m2, v2 = params["w2"], params["g2"], params["b2"], params["m2"], params["v2"]

    # Fold BatchNorm (eval mode) into per-channel scale / bias.
    s1 = g1 / jnp.sqrt(v1 + BN_EPS)
    b1 = be1 - m1 * s1
    s2 = g2 / jnp.sqrt(v2 + BN_EPS)
    b2 = be2 - m2 * s2

    N, Cin, H, W = x_nchw.shape
    Cout = w1.shape[-1]
    assert Cin == Cout, "BasicBlock with stride=1 / no downsample needs inplanes == planes"
    Hp, Wp = H + 2, W + 2
    L = Hp * Wp
    M = Wp + 1
    LE = L + 2 * M
    Cp = ((Cin + 7) // 8) * 8          # sublane-aligned channel count
    Kp = 9 * Cp
    NB = _pick_batch_block(N)
    grid = (N // NB,)

    # HWIO (3,3,I,O) -> tap-stacked (O, 9*Cp) bf16, zero-padded input channels.
    def prep_w(w):
        o, i = w.shape[-1], w.shape[-2]
        wt = jnp.transpose(w, (3, 0, 1, 2)).reshape(o, 9, i)
        wt = jnp.pad(wt, ((0, 0), (0, 0), (0, Cp - i)))
        return wt.reshape(o, 9 * Cp).astype(jnp.bfloat16)

    w12 = jnp.concatenate([prep_w(w1), prep_w(w2)], axis=1)     # (Cout, 2*Kp)
    sb = jnp.stack([s1, b1, s2, b2], axis=1)                    # (Cout, 4)

    # Interior mask over the flattened padded grid, tiled over the NB images.
    yy = jax.lax.broadcasted_iota(jnp.int32, (Hp, Wp), 0)
    xx = jax.lax.broadcasted_iota(jnp.int32, (Hp, Wp), 1)
    mask = ((yy >= 1) & (yy <= H) & (xx >= 1) & (xx <= W)).reshape(1, L)
    mask = jnp.tile(mask.astype(jnp.float32), (1, NB))          # (1, NB*L)

    x_flat = x_nchw.reshape(N, Cin, H * W)   # free, row-major metadata reshape

    kernel = functools.partial(_basic_block_kernel, H=H, W=W, NB=NB)

    # VMEM budget (mind v7x's 64 MiB parts): actual need x4 headroom, capped.
    vmem_need = (2 * NB * Cin * H * W * 4 + 2 * NB * Cout * H * W * 4 +
                 Cout * 2 * Kp * 2 + Cout * 4 * 4 + NB * L * 4 +
                 NB * Cin * LE * 2 + NB * Cout * LE * 2 + Kp * NB * L * 2)
    vmem_limit = int(min(48 * 1024 * 1024, max(16 * 1024 * 1024, 4 * vmem_need)))

    out_flat = pl.pallas_call(
        kernel,
        out_shape=jax.ShapeDtypeStruct((N, Cout, H * W), x_nchw.dtype),
        grid=grid,
        in_specs=[
            pl.BlockSpec((NB, Cin, H * W), lambda n: (n, 0, 0)),
            pl.BlockSpec((Cout, 2 * Kp), lambda n: (0, 0)),
            pl.BlockSpec((Cout, 4), lambda n: (0, 0)),
            pl.BlockSpec((1, NB * L), lambda n: (0, 0)),
        ],
        out_specs=pl.BlockSpec((NB, Cout, H * W), lambda n: (n, 0, 0)),
        scratch_shapes=[
            pltpu.VMEM((NB, Cin, LE), jnp.bfloat16),    # padded-flat input
            pltpu.VMEM((NB, Cout, LE), jnp.bfloat16),   # padded-flat conv1 act
            pltpu.VMEM((Kp, NB * L), jnp.bfloat16),     # tap-stacked operand
        ],
        compiler_params=pltpu.CompilerParams(
            dimension_semantics=("parallel",),
            vmem_limit_bytes=vmem_limit),
    )(x_flat, w12, sb, mask)

    return out_flat.reshape(N, Cout, H, W)


def reference_forward(x_nchw, params):
    """Pure-JAX reference (lax conv), matching the kernel's bf16-input /
    f32-accumulate matmul precision (residual added in f32)."""
    w1, g1, be1, m1, v1 = params["w1"], params["g1"], params["b1"], params["m1"], params["v1"]
    w2, g2, be2, m2, v2 = params["w2"], params["g2"], params["b2"], params["m2"], params["v2"]
    s1 = g1 / jnp.sqrt(v1 + BN_EPS)
    b1 = be1 - m1 * s1
    s2 = g2 / jnp.sqrt(v2 + BN_EPS)
    b2 = be2 - m2 * s2

    x = jnp.transpose(x_nchw, (0, 2, 3, 1))   # NHWC (reference only)

    def conv(a, w):
        return jax.lax.conv_general_dilated(
            a.astype(jnp.bfloat16), w.astype(jnp.bfloat16),
            window_strides=(1, 1), padding="SAME",
            dimension_numbers=("NHWC", "HWIO", "NHWC"),
            preferred_element_type=jnp.float32)

    out = jnp.maximum(conv(x, w1) * s1 + b1, 0.0)
    out = conv(out, w2) * s2 + b2
    out = jnp.maximum(out + x, 0.0)
    return jnp.transpose(out, (0, 3, 1, 2))


def init_params(key, inplanes, planes):
    ks = jax.random.split(key, 10)
    fan1 = 3 * 3 * inplanes
    fan2 = 3 * 3 * planes
    return {
        # HWIO conv weights (PyTorch stores OIHW; values here are synthetic).
        "w1": jax.random.normal(ks[0], (3, 3, inplanes, planes), jnp.float32)
              * (2.0 / fan1) ** 0.5,
        "g1": 1.0 + 0.1 * jax.random.normal(ks[1], (planes,), jnp.float32),
        "b1": 0.1 * jax.random.normal(ks[2], (planes,), jnp.float32),
        "m1": 0.05 * jax.random.normal(ks[3], (planes,), jnp.float32),
        "v1": jnp.ones((planes,), jnp.float32) * 0.9,
        "w2": jax.random.normal(ks[4], (3, 3, planes, planes), jnp.float32)
              * (2.0 / fan2) ** 0.5,
        "g2": 1.0 + 0.1 * jax.random.normal(ks[5], (planes,), jnp.float32),
        "b2": 0.1 * jax.random.normal(ks[6], (planes,), jnp.float32),
        "m2": 0.05 * jax.random.normal(ks[7], (planes,), jnp.float32),
        "v2": jnp.ones((planes,), jnp.float32) * 1.1,
    }


if __name__ == "__main__":
    N, C, H, W = 2, 4, 16, 16   # inplanes = planes = 4, stride = 1
    key = jax.random.PRNGKey(0)
    kx, kp = jax.random.split(key)
    x = jax.random.normal(kx, (N, C, H, W), jnp.float32)
    params = init_params(kp, C, C)

    out = jax.block_until_ready(basic_block_forward(x, params))
    ref = jax.block_until_ready(reference_forward(x, params))

    err = float(jnp.max(jnp.abs(out - ref)))
    assert out.shape == (N, C, H, W)
    assert err < 2e-3, f"mismatch vs reference: {err}"
    print("KERNEL_OK")
</pallas_src>

<mosaic_0001>
module attributes {stable_mosaic.version = 11 : i64} {
  func.func @_basic_block_kernel(%arg0: i32, %arg1: memref<1x4x256xf32, #tpu.memory_space<vmem>>, %arg2: memref<4x144xbf16, #tpu.memory_space<vmem>>, %arg3: memref<4x4xf32, #tpu.memory_space<vmem>>, %arg4: memref<1x324xf32, #tpu.memory_space<vmem>>, %arg5: memref<1x4x256xf32, #tpu.memory_space<vmem>>, %arg6: memref<1x4x362xbf16, #tpu.memory_space<vmem>>, %arg7: memref<1x4x362xbf16, #tpu.memory_space<vmem>>, %arg8: memref<72x324xbf16, #tpu.memory_space<vmem>>) attributes {dimension_semantics = [#tpu.dimension_semantics<parallel>], iteration_bounds = array<i64: 2>, scalar_prefetch = 0 : i64, scratch_operands = 3 : i64, tpu.core_type = #tpu.core_type<tc>, window_params = [{transform_indices = @transform_0, window_bounds = array<i64: 1, 4, 256>}, {pipeline_mode = #tpu.pipeline_mode<synchronous>, transform_indices = @transform_1, window_bounds = array<i64: 4, 144>}, {pipeline_mode = #tpu.pipeline_mode<synchronous>, transform_indices = @transform_2, window_bounds = array<i64: 4, 4>}, {pipeline_mode = #tpu.pipeline_mode<synchronous>, transform_indices = @transform_3, window_bounds = array<i64: 1, 324>}, {transform_indices = @transform_4, window_bounds = array<i64: 1, 4, 256>}]} {
    %cst = arith.constant 0.000000e+00 : bf16
    %0 = vector.broadcast %cst : bf16 to vector<1x4x362xbf16>
    %c0 = arith.constant 0 : index
    %c0_0 = arith.constant 0 : index
    %c0_1 = arith.constant 0 : index
    %1 = vector.load %arg6[%c0, %c0_0, %c0_1] : memref<1x4x362xbf16, #tpu.memory_space<vmem>>, vector<1x4x362xbf16>
    tpu.vector_store %arg6[%c0, %c0_0, %c0_1], %0 {strides = array<i32>} : memref<1x4x362xbf16, #tpu.memory_space<vmem>>, vector<1x4x362xbf16>,
    %cst_2 = arith.constant 0.000000e+00 : bf16
    %2 = vector.broadcast %cst_2 : bf16 to vector<4x19xbf16>
    %c0_3 = arith.constant 0 : index
    %c0_4 = arith.constant 0 : index
    %c0_5 = arith.constant 0 : index
    %3 = vector.load %arg7[%c0_3, %c0_4, %c0_5] : memref<1x4x362xbf16, #tpu.memory_space<vmem>>, vector<1x4x19xbf16>
    %4 = vector.shape_cast %3 : vector<1x4x19xbf16> to vector<4x19xbf16>
    %5 = vector.shape_cast %2 : vector<4x19xbf16> to vector<1x4x19xbf16>
    tpu.vector_store %arg7[%c0_3, %c0_4, %c0_5], %5 {strides = array<i32>} : memref<1x4x362xbf16, #tpu.memory_space<vmem>>, vector<1x4x19xbf16>,
    %c0_6 = arith.constant 0 : index
    %c0_7 = arith.constant 0 : index
    %c343 = arith.constant 343 : index
    %6 = vector.load %arg7[%c0_6, %c0_7, %c343] : memref<1x4x362xbf16, #tpu.memory_space<vmem>>, vector<1x4x19xbf16>
    %7 = vector.shape_cast %6 : vector<1x4x19xbf16> to vector<4x19xbf16>
    %8 = vector.shape_cast %2 : vector<4x19xbf16> to vector<1x4x19xbf16>
    tpu.vector_store %arg7[%c0_6, %c0_7, %c343], %8 {strides = array<i32>} : memref<1x4x362xbf16, #tpu.memory_space<vmem>>, vector<1x4x19xbf16>,
    %cst_8 = arith.constant 0.000000e+00 : bf16
    %9 = vector.broadcast %cst_8 : bf16 to vector<4x324xbf16>
    %c4 = arith.constant 4 : index
    %c0_9 = arith.constant 0 : index
    %10 = vector.load %arg8[%c4, %c0_9] : memref<72x324xbf16, #tpu.memory_space<vmem>>, vector<4x324xbf16>
    tpu.vector_store %arg8[%c4, %c0_9], %9 {strides = array<i32>} : memref<72x324xbf16, #tpu.memory_space<vmem>>, vector<4x324xbf16>,
    %c12 = arith.constant 12 : index
    %c0_10 = arith.constant 0 : index
    %11 = vector.load %arg8[%c12, %c0_10] : memref<72x324xbf16, #tpu.memory_space<vmem>>, vector<4x324xbf16>
    tpu.vector_store %arg8[%c12, %c0_10], %9 {strides = array<i32>} : memref<72x324xbf16, #tpu.memory_space<vmem>>, vector<4x324xbf16>,
    %c20 = arith.constant 20 : index
    %c0_11 = arith.constant 0 : index
    %12 = vector.load %arg8[%c20, %c0_11] : memref<72x324xbf16, #tpu.memory_space<vmem>>, vector<4x324xbf16>
    tpu.vector_store %arg8[%c20, %c0_11], %9 {strides = array<i32>} : memref<72x324xbf16, #tpu.memory_space<vmem>>, vector<4x324xbf16>,
    %c28 = arith.constant 28 : index
    %c0_12 = arith.constant 0 : index
    %13 = vector.load %arg8[%c28, %c0_12] : memref<72x324xbf16, #tpu.memory_space<vmem>>, vector<4x324xbf16>
    tpu.vector_store %arg8[%c28, %c0_12], %9 {strides = array<i32>} : memref<72x324xbf16, #tpu.memory_space<vmem>>, vector<4x324xbf16>,
    %c36 = arith.constant 36 : index
    %c0_13 = arith.constant 0 : index
    %14 = vector.load %arg8[%c36, %c0_13] : memref<72x324xbf16, #tpu.memory_space<vmem>>, vector<4x324xbf16>
    tpu.vector_store %arg8[%c36, %c0_13], %9 {strides = array<i32>} : memref<72x324xbf16, #tpu.memory_space<vmem>>, vector<4x324xbf16>,
    %c44 = arith.constant 44 : index
    %c0_14 = arith.constant 0 : index
    %15 = vector.load %arg8[%c44, %c0_14] : memref<72x324xbf16, #tpu.memory_space<vmem>>, vector<4x324xbf16>
    tpu.vector_store %arg8[%c44, %c0_14], %9 {strides = array<i32>} : memref<72x324xbf16, #tpu.memory_space<vmem>>, vector<4x324xbf16>,
    %c52 = arith.constant 52 : index
    %c0_15 = arith.constant 0 : index
    %16 = vector.load %arg8[%c52, %c0_15] : memref<72x324xbf16, #tpu.memory_space<vmem>>, vector<4x324xbf16>
    tpu.vector_store %arg8[%c52, %c0_15], %9 {strides = array<i32>} : memref<72x324xbf16, #tpu.memory_space<vmem>>, vector<4x324xbf16>,
    %c60 = arith.constant 60 : index
    %c0_16 = arith.constant 0 : index
    %17 = vector.load %arg8[%c60, %c0_16] : memref<72x324xbf16, #tpu.memory_space<vmem>>, vector<4x324xbf16>
    tpu.vector_store %arg8[%c60, %c0_16], %9 {strides = array<i32>} : memref<72x324xbf16, #tpu.memory_space<vmem>>, vector<4x324xbf16>,
    %c68 = arith.constant 68 : index
    %c0_17 = arith.constant 0 : index
    %18 = vector.load %arg8[%c68, %c0_17] : memref<72x324xbf16, #tpu.memory_space<vmem>>, vector<4x324xbf16>
    tpu.vector_store %arg8[%c68, %c0_17], %9 {strides = array<i32>} : memref<72x324xbf16, #tpu.memory_space<vmem>>, vector<4x324xbf16>,
    %c0_18 = arith.constant 0 : index
    %c0_19 = arith.constant 0 : index
    %c0_20 = arith.constant 0 : index
    %19 = vector.load %arg1[%c0_18, %c0_19, %c0_20] : memref<1x4x256xf32, #tpu.memory_space<vmem>>, vector<1x4x16xf32>
    %20 = vector.shape_cast %19 : vector<1x4x16xf32> to vector<4x16xf32>
    %21 = arith.truncf %20 : vector<4x16xf32> to vector<4x16xbf16>
    %c0_21 = arith.constant 0 : index
    %c0_22 = arith.constant 0 : index
    %c38 = arith.constant 38 : index
    %22 = vector.load %arg6[%c0_21, %c0_22, %c38] : memref<1x4x362xbf16, #tpu.memory_space<vmem>>, vector<1x4x16xbf16>
    %23 = vector.shape_cast %22 : vector<1x4x16xbf16> to vector<4x16xbf16>
    %24 = vector.shape_cast %21 : vector<4x16xbf16> to vector<1x4x16xbf16>
    tpu.vector_store %arg6[%c0_21, %c0_22, %c38], %24 {strides = array<i32>} : memref<1x4x362xbf16, #tpu.memory_space<vmem>>, vector<1x4x16xbf16>,
    %c0_23 = arith.constant 0 : index
    %c0_24 = arith.constant 0 : index
    %c16 = arith.constant 16 : index
    %25 = vector.load %arg1[%c0_23, %c0_24, %c16] : memref<1x4x256xf32, #tpu.memory_space<vmem>>, vector<1x4x16xf32>
    %26 = vector.shape_cast %25 : vector<1x4x16xf32> to vector<4x16xf32>
    %27 = arith.truncf %26 : vector<4x16xf32> to vector<4x16xbf16>
    %c0_25 = arith.constant 0 : index
    %c0_26 = arith.constant 0 : index
    %c56 = arith.constant 56 : index
    %28 = vector.load %arg6[%c0_25, %c0_26, %c56] : memref<1x4x362xbf16, #tpu.memory_space<vmem>>, vector<1x4x16xbf16>
    %29 = vector.shape_cast %28 : vector<1x4x16xbf16> to vector<4x16xbf16>
    %30 = vector.shape_cast %27 : vector<4x16xbf16> to vector<1x4x16xbf16>
    tpu.vector_store %arg6[%c0_25, %c0_26, %c56], %30 {strides = array<i32>} : memref<1x4x362xbf16, #tpu.memory_space<vmem>>, vector<1x4x16xbf16>,
    %c0_27 = arith.constant 0 : index
    %c0_28 = arith.constant 0 : index
    %c32 = arith.constant 32 : index
    %31 = vector.load %arg1[%c0_27, %c0_28, %c32] : memref<1x4x256xf32, #tpu.memory_space<vmem>>, vector<1x4x16xf32>
    %32 = vector.shape_cast %31 : vector<1x4x16xf32> to vector<4x16xf32>
    %33 = arith.truncf %32 : vector<4x16xf32> to vector<4x16xbf16>
    %c0_29 = arith.constant 0 : index
    %c0_30 = arith.constant 0 : index
    %c74 = arith.constant 74 : index
    %34 = vector.load %arg6[%c0_29, %c0_30, %c74] : memref<1x4x362xbf16, #tpu.memory_space<vmem>>, vector<1x4x16xbf16>
    %35 = vector.shape_cast %34 : vector<1x4x16xbf16> to vector<4x16xbf16>
    %36 = vector.shape_cast %33 : vector<4x16xbf16> to vector<1x4x16xbf16>
    tpu.vector_store %arg6[%c0_29, %c0_30, %c74], %36 {strides = array<i32>} : memref<1x4x362xbf16, #tpu.memory_space<vmem>>, vector<1x4x16xbf16>,
    %c0_31 = arith.constant 0 : index
    %c0_32 = arith.constant 0 : index
    %c48 = arith.constant 48 : index
    %37 = vector.load %arg1[%c0_31, %c0_32, %c48] : memref<1x4x256xf32, #tpu.memory_space<vmem>>, vector<1x4x16xf32>
    %38 = vector.shape_cast %37 : vector<1x4x16xf32> to vector<4x16xf32>
    %39 = arith.truncf %38 : vector<4x16xf32> to vector<4x16xbf16>
    %c0_33 = arith.constant 0 : index
    %c0_34 = arith.constant 0 : index
    %c92 = arith.constant 92 : index
    %40 = vector.load %arg6[%c0_33, %c0_34, %c92] : memref<1x4x362xbf16, #tpu.memory_space<vmem>>, vector<1x4x16xbf16>
    %41 = vector.shape_cast %40 : vector<1x4x16xbf16> to vector<4x16xbf16>
    %42 = vector.shape_cast %39 : vector<4x16xbf16> to vector<1x4x16xbf16>
    tpu.vector_store %arg6[%c0_33, %c0_34, %c92], %42 {strides = array<i32>} : memref<1x4x362xbf16, #tpu.memory_space<vmem>>, vector<1x4x16xbf16>,
    %c0_35 = arith.constant 0 : index
    %c0_36 = arith.constant 0 : index
    %c64 = arith.constant 64 : index
    %43 = vector.load %arg1[%c0_35, %c0_36, %c64] : memref<1x4x256xf32, #tpu.memory_space<vmem>>, vector<1x4x16xf32>
    %44 = vector.shape_cast %43 : vector<1x4x16xf32> to vector<4x16xf32>
    %45 = arith.truncf %44 : vector<4x16xf32> to vector<4x16xbf16>
    %c0_37 = arith.constant 0 : index
    %c0_38 = arith.constant 0 : index
    %c110 = arith.constant 110 : index
    %46 = vector.load %arg6[%c0_37, %c0_38, %c110] : memref<1x4x362xbf16, #tpu.memory_space<vmem>>, vector<1x4x16xbf16>
    %47 = vector.shape_cast %46 : vector<1x4x16xbf16> to vector<4x16xbf16>
    %48 = vector.shape_cast %45 : vector<4x16xbf16> to vector<1x4x16xbf16>
    tpu.vector_store %arg6[%c0_37, %c0_38, %c110], %48 {strides = array<i32>} : memref<1x4x362xbf16, #tpu.memory_space<vmem>>, vector<1x4x16xbf16>,
    %c0_39 = arith.constant 0 : index
    %c0_40 = arith.constant 0 : index
    %c80 = arith.constant 80 : index
    %49 = vector.load %arg1[%c0_39, %c0_40, %c80] : memref<1x4x256xf32, #tpu.memory_space<vmem>>, vector<1x4x16xf32>
    %50 = vector.shape_cast %49 : vector<1x4x16xf32> to vector<4x16xf32>
    %51 = arith.truncf %50 : vector<4x16xf32> to vector<4x16xbf16>
    %c0_41 = arith.constant 0 : index
    %c0_42 = arith.constant 0 : index
    %c128 = arith.constant 128 : index
    %52 = vector.load %arg6[%c0_41, %c0_42, %c128] : memref<1x4x362xbf16, #tpu.memory_space<vmem>>, vector<1x4x16xbf16>
    %53 = vector.shape_cast %52 : vector<1x4x16xbf16> to vector<4x16xbf16>
    %54 = vector.shape_cast %51 : vector<4x16xbf16> to vector<1x4x16xbf16>
    tpu.vector_store %arg6[%c0_41, %c0_42, %c128], %54 {strides = array<i32>} : memref<1x4x362xbf16, #tpu.memory_space<vmem>>, vector<1x4x16xbf16>,
    %c0_43 = arith.constant 0 : index
    %c0_44 = arith.constant 0 : index
    %c96 = arith.constant 96 : index
    %55 = vector.load %arg1[%c0_43, %c0_44, %c96] : memref<1x4x256xf32, #tpu.memory_space<vmem>>, vector<1x4x16xf32>
    %56 = vector.shape_cast %55 : vector<1x4x16xf32> to vector<4x16xf32>
    %57 = arith.truncf %56 : vector<4x16xf32> to vector<4x16xbf16>
    %c0_45 = arith.constant 0 : index
    %c0_46 = arith.constant 0 : index
    %c146 = arith.constant 146 : index
    %58 = vector.load %arg6[%c0_45, %c0_46, %c146] : memref<1x4x362xbf16, #tpu.memory_space<vmem>>, vector<1x4x16xbf16>
    %59 = vector.shape_cast %58 : vector<1x4x16xbf16> to vector<4x16xbf16>
    %60 = vector.shape_cast %57 : vector<4x16xbf16> to vector<1x4x16xbf16>
    tpu.vector_store %arg6[%c0_45, %c0_46, %c146], %60 {strides = array<i32>} : memref<1x4x362xbf16, #tpu.memory_space<vmem>>, vector<1x4x16xbf16>,
    %c0_47 = arith.constant 0 : index
    %c0_48 = arith.constant 0 : index
    %c112 = arith.constant 112 : index
    %61 = vector.load %arg1[%c0_47, %c0_48, %c112] : memref<1x4x256xf32, #tpu.memory_space<vmem>>, vector<1x4x16xf32>
    %62 = vector.shape_cast %61 : vector<1x4x16xf32> to vector<4x16xf32>
    %63 = arith.truncf %62 : vector<4x16xf32> to vector<4x16xbf16>
    %c0_49 = arith.constant 0 : index
    %c0_50 = arith.constant 0 : index
    %c164 = arith.constant 164 : index
    %64 = vector.load %arg6[%c0_49, %c0_50, %c164] : memref<1x4x362xbf16, #tpu.memory_space<vmem>>, vector<1x4x16xbf16>
    %65 = vector.shape_cast %64 : vector<1x4x16xbf16> to vector<4x16xbf16>
    %66 = vector.shape_cast %63 : vector<4x16xbf16> to vector<1x4x16xbf16>
    tpu.vector_store %arg6[%c0_49, %c0_50, %c164], %66 {strides = array<i32>} : memref<1x4x362xbf16, #tpu.memory_space<vmem>>, vector<1x4x16xbf16>,
    %c0_51 = arith.constant 0 : index
    %c0_52 = arith.constant 0 : index
    %c128_53 = arith.constant 128 : index
    %67 = vector.load %arg1[%c0_51, %c0_52, %c128_53] : memref<1x4x256xf32, #tpu.memory_space<vmem>>, vector<1x4x16xf32>
    %68 = vector.shape_cast %67 : vector<1x4x16xf32> to vector<4x16xf32>
    %69 = arith.truncf %68 : vector<4x16xf32> to vector<4x16xbf16>
    %c0_54 = arith.constant 0 : index
    %c0_55 = arith.constant 0 : index
    %c182 = arith.constant 182 : index
    %70 = vector.load %arg6[%c0_54, %c0_55, %c182] : memref<1x4x362xbf16, #tpu.memory_space<vmem>>, vector<1x4x16xbf16>
    %71 = vector.shape_cast %70 : vector<1x4x16xbf16> to vector<4x16xbf16>
    %72 = vector.shape_cast %69 : vector<4x16xbf16> to vector<1x4x16xbf16>
    tpu.vector_store %arg6[%c0_54, %c0_55, %c182], %72 {strides = array<i32>} : memref<1x4x362xbf16, #tpu.memory_space<vmem>>, vector<1x4x16xbf16>,
    %c0_56 = arith.constant 0 : index
    %c0_57 = arith.constant 0 : index
    %c144 = arith.constant 144 : index
    %73 = vector.load %arg1[%c0_56, %c0_57, %c144] : memref<1x4x256xf32, #tpu.memory_space<vmem>>, vector<1x4x16xf32>
    %74 = vector.shape_cast %73 : vector<1x4x16xf32> to vector<4x16xf32>
    %75 = arith.truncf %74 : vector<4x16xf32> to vector<4x16xbf16>
    %c0_58 = arith.constant 0 : index
    %c0_59 = arith.constant 0 : index
    %c200 = arith.constant 200 : index
    %76 = vector.load %arg6[%c0_58, %c0_59, %c200] : memref<1x4x362xbf16, #tpu.memory_space<vmem>>, vector<1x4x16xbf16>
    %77 = vector.shape_cast %76 : vector<1x4x16xbf16> to vector<4x16xbf16>
    %78 = vector.shape_cast %75 : vector<4x16xbf16> to vector<1x4x16xbf16>
    tpu.vector_store %arg6[%c0_58, %c0_59, %c200], %78 {strides = array<i32>} : memref<1x4x362xbf16, #tpu.memory_space<vmem>>, vector<1x4x16xbf16>,
    %c0_60 = arith.constant 0 : index
    %c0_61 = arith.constant 0 : index
    %c160 = arith.constant 160 : index
    %79 = vector.load %arg1[%c0_60, %c0_61, %c160] : memref<1x4x256xf32, #tpu.memory_space<vmem>>, vector<1x4x16xf32>
    %80 = vector.shape_cast %79 : vector<1x4x16xf32> to vector<4x16xf32>
    %81 = arith.truncf %80 : vector<4x16xf32> to vector<4x16xbf16>
    %c0_62 = arith.constant 0 : index
    %c0_63 = arith.constant 0 : index
    %c218 = arith.constant 218 : index
    %82 = vector.load %arg6[%c0_62, %c0_63, %c218] : memref<1x4x362xbf16, #tpu.memory_space<vmem>>, vector<1x4x16xbf16>
    %83 = vector.shape_cast %82 : vector<1x4x16xbf16> to vector<4x16xbf16>
    %84 = vector.shape_cast %81 : vector<4x16xbf16> to vector<1x4x16xbf16>
    tpu.vector_store %arg6[%c0_62, %c0_63, %c218], %84 {strides = array<i32>} : memref<1x4x362xbf16, #tpu.memory_space<vmem>>, vector<1x4x16xbf16>,
    %c0_64 = arith.constant 0 : index
    %c0_65 = arith.constant 0 : index
    %c176 = arith.constant 176 : index
    %85 = vector.load %arg1[%c0_64, %c0_65, %c176] : memref<1x4x256xf32, #tpu.memory_space<vmem>>, vector<1x4x16xf32>
    %86 = vector.shape_cast %85 : vector<1x4x16xf32> to vector<4x16xf32>
    %87 = arith.truncf %86 : vector<4x16xf32> to vector<4x16xbf16>
    %c0_66 = arith.constant 0 : index
    %c0_67 = arith.constant 0 : index
    %c236 = arith.constant 236 : index
    %88 = vector.load %arg6[%c0_66, %c0_67, %c236] : memref<1x4x362xbf16, #tpu.memory_space<vmem>>, vector<1x4x16xbf16>
    %89 = vector.shape_cast %88 : vector<1x4x16xbf16> to vector<4x16xbf16>
    %90 = vector.shape_cast %87 : vector<4x16xbf16> to vector<1x4x16xbf16>
    tpu.vector_store %arg6[%c0_66, %c0_67, %c236], %90 {strides = array<i32>} : memref<1x4x362xbf16, #tpu.memory_space<vmem>>, vector<1x4x16xbf16>,
    %c0_68 = arith.constant 0 : index
    %c0_69 = arith.constant 0 : index
    %c192 = arith.constant 192 : index
    %91 = vector.load %arg1[%c0_68, %c0_69, %c192] : memref<1x4x256xf32, #tpu.memory_space<vmem>>, vector<1x4x16xf32>
    %92 = vector.shape_cast %91 : vector<1x4x16xf32> to vector<4x16xf32>
    %93 = arith.truncf %92 : vector<4x16xf32> to vector<4x16xbf16>
    %c0_70 = arith.constant 0 : index
    %c0_71 = arith.constant 0 : index
    %c254 = arith.constant 254 : index
    %94 = vector.load %arg6[%c0_70, %c0_71, %c254] : memref<1x4x362xbf16, #tpu.memory_space<vmem>>, vector<1x4x16xbf16>
    %95 = vector.shape_cast %94 : vector<1x4x16xbf16> to vector<4x16xbf16>
    %96 = vector.shape_cast %93 : vector<4x16xbf16> to vector<1x4x16xbf16>
    tpu.vector_store %arg6[%c0_70, %c0_71, %c254], %96 {strides = array<i32>} : memref<1x4x362xbf16, #tpu.memory_space<vmem>>, vector<1x4x16xbf16>,
    %c0_72 = arith.constant 0 : index
    %c0_73 = arith.constant 0 : index
    %c208 = arith.constant 208 : index
    %97 = vector.load %arg1[%c0_72, %c0_73, %c208] : memref<1x4x256xf32, #tpu.memory_space<vmem>>, vector<1x4x16xf32>
    %98 = vector.shape_cast %97 : vector<1x4x16xf32> to vector<4x16xf32>
    %99 = arith.truncf %98 : vector<4x16xf32> to vector<4x16xbf16>
    %c0_74 = arith.constant 0 : index
    %c0_75 = arith.constant 0 : index
    %c272 = arith.constant 272 : index
    %100 = vector.load %arg6[%c0_74, %c0_75, %c272] : memref<1x4x362xbf16, #tpu.memory_space<vmem>>, vector<1x4x16xbf16>
    %101 = vector.shape_cast %100 : vector<1x4x16xbf16> to vector<4x16xbf16>
    %102 = vector.shape_cast %99 : vector<4x16xbf16> to vector<1x4x16xbf16>
    tpu.vector_store %arg6[%c0_74, %c0_75, %c272], %102 {strides = array<i32>} : memref<1x4x362xbf16, #tpu.memory_space<vmem>>, vector<1x4x16xbf16>,
    %c0_76 = arith.constant 0 : index
    %c0_77 = arith.constant 0 : index
    %c224 = arith.constant 224 : index
    %103 = vector.load %arg1[%c0_76, %c0_77, %c224] : memref<1x4x256xf32, #tpu.memory_space<vmem>>, vector<1x4x16xf32>
    %104 = vector.shape_cast %103 : vector<1x4x16xf32> to vector<4x16xf32>
    %105 = arith.truncf %104 : vector<4x16xf32> to vector<4x16xbf16>
    %c0_78 = arith.constant 0 : index
    %c0_79 = arith.constant 0 : index
    %c290 = arith.constant 290 : index
    %106 = vector.load %arg6[%c0_78, %c0_79, %c290] : memref<1x4x362xbf16, #tpu.memory_space<vmem>>, vector<1x4x16xbf16>
    %107 = vector.shape_cast %106 : vector<1x4x16xbf16> to vector<4x16xbf16>
    %108 = vector.shape_cast %105 : vector<4x16xbf16> to vector<1x4x16xbf16>
    tpu.vector_store %arg6[%c0_78, %c0_79, %c290], %108 {strides = array<i32>} : memref<1x4x362xbf16, #tpu.memory_space<vmem>>, vector<1x4x16xbf16>,
    %c0_80 = arith.constant 0 : index
    %c0_81 = arith.constant 0 : index
    %c240 = arith.constant 240 : index
    %109 = vector.load %arg1[%c0_80, %c0_81, %c240] : memref<1x4x256xf32, #tpu.memory_space<vmem>>, vector<1x4x16xf32>
    %110 = vector.shape_cast %109 : vector<1x4x16xf32> to vector<4x16xf32>
    %111 = arith.truncf %110 : vector<4x16xf32> to vector<4x16xbf16>
    %c0_82 = arith.constant 0 : index
    %c0_83 = arith.constant 0 : index
    %c308 = arith.constant 308 : index
    %112 = vector.load %arg6[%c0_82, %c0_83, %c308] : memref<1x4x362xbf16, #tpu.memory_space<vmem>>, vector<1x4x16xbf16>
    %113 = vector.shape_cast %112 : vector<1x4x16xbf16> to vector<4x16xbf16>
    %114 = vector.shape_cast %111 : vector<4x16xbf16> to vector<1x4x16xbf16>
    tpu.vector_store %arg6[%c0_82, %c0_83, %c308], %114 {strides = array<i32>} : memref<1x4x362xbf16, #tpu.memory_space<vmem>>, vector<1x4x16xbf16>,
    %c0_84 = arith.constant 0 : index
    %c0_85 = arith.constant 0 : index
    %c0_86 = arith.constant 0 : index
    %115 = vector.load %arg6[%c0_84, %c0_85, %c0_86] : memref<1x4x362xbf16, #tpu.memory_space<vmem>>, vector<1x4x324xbf16>
    %116 = vector.shape_cast %115 : vector<1x4x324xbf16> to vector<4x324xbf16>
    %c0_87 = arith.constant 0 : index
    %c0_88 = arith.constant 0 : index
    %117 = vector.load %arg8[%c0_87, %c0_88] : memref<72x324xbf16, #tpu.memory_space<vmem>>, vector<4x324xbf16>
    tpu.vector_store %arg8[%c0_87, %c0_88], %116 {strides = array<i32>} : memref<72x324xbf16, #tpu.memory_space<vmem>>, vector<4x324xbf16>,
    %c0_89 = arith.constant 0 : index
    %c0_90 = arith.constant 0 : index
    %c1 = arith.constant 1 : index
    %118 = vector.load %arg6[%c0_89, %c0_90, %c1] : memref<1x4x362xbf16, #tpu.memory_space<vmem>>, vector<1x4x324xbf16>
    %119 = vector.shape_cast %118 : vector<1x4x324xbf16> to vector<4x324xbf16>
    %c8 = arith.constant 8 : index
    %c0_91 = arith.constant 0 : index
    %120 = vector.load %arg8[%c8, %c0_91] : memref<72x324xbf16, #tpu.memory_space<vmem>>, vector<4x324xbf16>
    tpu.vector_store %arg8[%c8, %c0_91], %119 {strides = array<i32>} : memref<72x324xbf16, #tpu.memory_space<vmem>>, vector<4x324xbf16>,
    %c0_92 = arith.constant 0 : index
    %c0_93 = arith.constant 0 : index
    %c2 = arith.constant 2 : index
    %121 = vector.load %arg6[%c0_92, %c0_93, %c2] : memref<1x4x362xbf16, #tpu.memory_space<vmem>>, vector<1x4x324xbf16>
    %122 = vector.shape_cast %121 : vector<1x4x324xbf16> to vector<4x324xbf16>
    %c16_94 = arith.constant 16 : index
    %c0_95 = arith.constant 0 : index
    %123 = vector.load %arg8[%c16_94, %c0_95] : memref<72x324xbf16, #tpu.memory_space<vmem>>, vector<4x324xbf16>
    tpu.vector_store %arg8[%c16_94, %c0_95], %122 {strides = array<i32>} : memref<72x324xbf16, #tpu.memory_space<vmem>>, vector<4x324xbf16>,
    %c0_96 = arith.constant 0 : index
    %c0_97 = arith.constant 0 : index
    %c18 = arith.constant 18 : index
    %124 = vector.load %arg6[%c0_96, %c0_97, %c18] : memref<1x4x362xbf16, #tpu.memory_space<vmem>>, vector<1x4x324xbf16>
    %125 = vector.shape_cast %124 : vector<1x4x324xbf16> to vector<4x324xbf16>
    %c24 = arith.constant 24 : index
    %c0_98 = arith.constant 0 : index
    %126 = vector.load %arg8[%c24, %c0_98] : memref<72x324xbf16, #tpu.memory_space<vmem>>, vector<4x324xbf16>
    tpu.vector_store %arg8[%c24, %c0_98], %125 {strides = array<i32>} : memref<72x324xbf16, #tpu.memory_space<vmem>>, vector<4x324xbf16>,
    %c0_99 = arith.constant 0 : index
    %c0_100 = arith.constant 0 : index
    %c19 = arith.constant 19 : index
    %127 = vector.load %arg6[%c0_99, %c0_100, %c19] : memref<1x4x362xbf16, #tpu.memory_space<vmem>>, vector<1x4x324xbf16>
    %128 = vector.shape_cast %127 : vector<1x4x324xbf16> to vector<4x324xbf16>
    %c32_101 = arith.constant 32 : index
    %c0_102 = arith.constant 0 : index
    %129 = vector.load %arg8[%c32_101, %c0_102] : memref<72x324xbf16, #tpu.memory_space<vmem>>, vector<4x324xbf16>
    tpu.vector_store %arg8[%c32_101, %c0_102], %128 {strides = array<i32>} : memref<72x324xbf16, #tpu.memory_space<vmem>>, vector<4x324xbf16>,
    %c0_103 = arith.constant 0 : index
    %c0_104 = arith.constant 0 : index
    %c20_105 = arith.constant 20 : index
    %130 = vector.load %arg6[%c0_103, %c0_104, %c20_105] : memref<1x4x362xbf16, #tpu.memory_space<vmem>>, vector<1x4x324xbf16>
    %131 = vector.shape_cast %130 : vector<1x4x324xbf16> to vector<4x324xbf16>
    %c40 = arith.constant 40 : index
    %c0_106 = arith.constant 0 : index
    %132 = vector.load %arg8[%c40, %c0_106] : memref<72x324xbf16, #tpu.memory_space<vmem>>, vector<4x324xbf16>
    tpu.vector_store %arg8[%c40, %c0_106], %131 {strides = array<i32>} : memref<72x324xbf16, #tpu.memory_space<vmem>>, vector<4x324xbf16>,
    %c0_107 = arith.constant 0 : index
    %c0_108 = arith.constant 0 : index
    %c36_109 = arith.constant 36 : index
    %133 = vector.load %arg6[%c0_107, %c0_108, %c36_109] : memref<1x4x362xbf16, #tpu.memory_space<vmem>>, vector<1x4x324xbf16>
    %134 = vector.shape_cast %133 : vector<1x4x324xbf16> to vector<4x324xbf16>
    %c48_110 = arith.constant 48 : index
    %c0_111 = arith.constant 0 : index
    %135 = vector.load %arg8[%c48_110, %c0_111] : memref<72x324xbf16, #tpu.memory_space<vmem>>, vector<4x324xbf16>
    tpu.vector_store %arg8[%c48_110, %c0_111], %134 {strides = array<i32>} : memref<72x324xbf16, #tpu.memory_space<vmem>>, vector<4x324xbf16>,
    %c0_112 = arith.constant 0 : index
    %c0_113 = arith.constant 0 : index
    %c37 = arith.constant 37 : index
    %136 = vector.load %arg6[%c0_112, %c0_113, %c37] : memref<1x4x362xbf16, #tpu.memory_space<vmem>>, vector<1x4x324xbf16>
    %137 = vector.shape_cast %136 : vector<1x4x324xbf16> to vector<4x324xbf16>
    %c56_114 = arith.constant 56 : index
    %c0_115 = arith.constant 0 : index
    %138 = vector.load %arg8[%c56_114, %c0_115] : memref<72x324xbf16, #tpu.memory_space<vmem>>, vector<4x324xbf16>
    tpu.vector_store %arg8[%c56_114, %c0_115], %137 {strides = array<i32>} : memref<72x324xbf16, #tpu.memory_space<vmem>>, vector<4x324xbf16>,
    %c0_116 = arith.constant 0 : index
    %c0_117 = arith.constant 0 : index
    %c38_118 = arith.constant 38 : index
    %139 = vector.load %arg6[%c0_116, %c0_117, %c38_118] : memref<1x4x362xbf16, #tpu.memory_space<vmem>>, vector<1x4x324xbf16>
    %140 = vector.shape_cast %139 : vector<1x4x324xbf16> to vector<4x324xbf16>
    %c64_119 = arith.constant 64 : index
    %c0_120 = arith.constant 0 : index
    %141 = vector.load %arg8[%c64_119, %c0_120] : memref<72x324xbf16, #tpu.memory_space<vmem>>, vector<4x324xbf16>
    tpu.vector_store %arg8[%c64_119, %c0_120], %140 {strides = array<i32>} : memref<72x324xbf16, #tpu.memory_space<vmem>>, vector<4x324xbf16>,
    %c0_121 = arith.constant 0 : index
    %c0_122 = arith.constant 0 : index
    %142 = vector.load %arg2[%c0_121, %c0_122] : memref<4x144xbf16, #tpu.memory_space<vmem>>, vector<4x72xbf16>
    %c0_123 = arith.constant 0 : index
    %c0_124 = arith.constant 0 : index
    %143 = vector.load %arg8[%c0_123, %c0_124] : memref<72x324xbf16, #tpu.memory_space<vmem>>, vector<72x324xbf16>
    %cst_125 = arith.constant dense<0.000000e+00> : vector<4x324xf32>
    %144 = tpu.matmul %142, %143, %cst_125 {dimension_numbers = #tpu.dot_dimension_numbers<[1], [0], [0], [1], [0, 0, 1, 1], [], []>} : vector<4x72xbf16>, vector<72x324xbf16>, vector<4x324xf32> -> vector<4x324xf32>
    %c0_126 = arith.constant 0 : index
    %c0_127 = arith.constant 0 : index
    %145 = vector.load %arg3[%c0_126, %c0_127] : memref<4x4xf32, #tpu.memory_space<vmem>>, vector<4x1xf32>
    %c0_128 = arith.constant 0 : index
    %c1_129 = arith.constant 1 : index
    %146 = vector.load %arg3[%c0_128, %c1_129] : memref<4x4xf32, #tpu.memory_space<vmem>>, vector<4x1xf32>
    %147 = vector.broadcast %145 : vector<4x1xf32> to vector<4x324xf32>
    %148 = arith.mulf %144, %147 : vector<4x324xf32>
    %149 = vector.broadcast %146 : vector<4x1xf32> to vector<4x324xf32>
    %150 = arith.addf %148, %149 : vector<4x324xf32>
    %cst_130 = arith.constant 0.000000e+00 : f32
    %151 = vector.broadcast %cst_130 : f32 to vector<4x324xf32>
    %152 = arith.maximumf %150, %151 : vector<4x324xf32>
    %c0_131 = arith.constant 0 : index
    %c0_132 = arith.constant 0 : index
    %153 = vector.load %arg4[%c0_131, %c0_132] : memref<1x324xf32, #tpu.memory_space<vmem>>, vector<1x324xf32>
    %154 = vector.broadcast %153 : vector<1x324xf32> to vector<4x324xf32>
    %155 = arith.mulf %152, %154 : vector<4x324xf32>
    %156 = arith.truncf %155 : vector<4x324xf32> to vector<4x324xbf16>
    %c0_133 = arith.constant 0 : index
    %c0_134 = arith.constant 0 : index
    %c19_135 = arith.constant 19 : index
    %157 = vector.load %arg7[%c0_133, %c0_134, %c19_135] : memref<1x4x362xbf16, #tpu.memory_space<vmem>>, vector<1x4x324xbf16>
    %158 = vector.shape_cast %157 : vector<1x4x324xbf16> to vector<4x324xbf16>
    %159 = vector.shape_cast %156 : vector<4x324xbf16> to vector<1x4x324xbf16>
    tpu.vector_store %arg7[%c0_133, %c0_134, %c19_135], %159 {strides = array<i32>} : memref<1x4x362xbf16, #tpu.memory_space<vmem>>, vector<1x4x324xbf16>,
    %c0_136 = arith.constant 0 : index
    %c0_137 = arith.constant 0 : index
    %c0_138 = arith.constant 0 : index
    %160 = vector.load %arg7[%c0_136, %c0_137, %c0_138] : memref<1x4x362xbf16, #tpu.memory_space<vmem>>, vector<1x4x324xbf16>
    %161 = vector.shape_cast %160 : vector<1x4x324xbf16> to vector<4x324xbf16>
    %c0_139 = arith.constant 0 : index
    %c0_140 = arith.constant 0 : index
    %162 = vector.load %arg8[%c0_139, %c0_140] : memref<72x324xbf16, #tpu.memory_space<vmem>>, vector<4x324xbf16>
    tpu.vector_store %arg8[%c0_139, %c0_140], %161 {strides = array<i32>} : memref<72x324xbf16, #tpu.memory_space<vmem>>, vector<4x324xbf16>,
    %c0_141 = arith.constant 0 : index
    %c0_142 = arith.constant 0 : index
    %c1_143 = arith.constant 1 : index
    %163 = vector.load %arg7[%c0_141, %c0_142, %c1_143] : memref<1x4x362xbf16, #tpu.memory_space<vmem>>, vector<1x4x324xbf16>
    %164 = vector.shape_cast %163 : vector<1x4x324xbf16> to vector<4x324xbf16>
    %c8_144 = arith.constant 8 : index
    %c0_145 = arith.constant 0 : index
    %165 = vector.load %arg8[%c8_144, %c0_145] : memref<72x324xbf16, #tpu.memory_space<vmem>>, vector<4x324xbf16>
    tpu.vector_store %arg8[%c8_144, %c0_145], %164 {strides = array<i32>} : memref<72x324xbf16, #tpu.memory_space<vmem>>, vector<4x324xbf16>,
    %c0_146 = arith.constant 0 : index
    %c0_147 = arith.constant 0 : index
    %c2_148 = arith.constant 2 : index
    %166 = vector.load %arg7[%c0_146, %c0_147, %c2_148] : memref<1x4x362xbf16, #tpu.memory_space<vmem>>, vector<1x4x324xbf16>
    %167 = vector.shape_cast %166 : vector<1x4x324xbf16> to vector<4x324xbf16>
    %c16_149 = arith.constant 16 : index
    %c0_150 = arith.constant 0 : index
    %168 = vector.load %arg8[%c16_149, %c0_150] : memref<72x324xbf16, #tpu.memory_space<vmem>>, vector<4x324xbf16>
    tpu.vector_store %arg8[%c16_149, %c0_150], %167 {strides = array<i32>} : memref<72x324xbf16, #tpu.memory_space<vmem>>, vector<4x324xbf16>,
    %c0_151 = arith.constant 0 : index
    %c0_152 = arith.constant 0 : index
    %c18_153 = arith.constant 18 : index
    %169 = vector.load %arg7[%c0_151, %c0_152, %c18_153] : memref<1x4x362xbf16, #tpu.memory_space<vmem>>, vector<1x4x324xbf16>
    %170 = vector.shape_cast %169 : vector<1x4x324xbf16> to vector<4x324xbf16>
    %c24_154 = arith.constant 24 : index
    %c0_155 = arith.constant 0 : index
    %171 = vector.load %arg8[%c24_154, %c0_155] : memref<72x324xbf16, #tpu.memory_space<vmem>>, vector<4x324xbf16>
    tpu.vector_store %arg8[%c24_154, %c0_155], %170 {strides = array<i32>} : memref<72x324xbf16, #tpu.memory_space<vmem>>, vector<4x324xbf16>,
    %c0_156 = arith.constant 0 : index
    %c0_157 = arith.constant 0 : index
    %c19_158 = arith.constant 19 : index
    %172 = vector.load %arg7[%c0_156, %c0_157, %c19_158] : memref<1x4x362xbf16, #tpu.memory_space<vmem>>, vector<1x4x324xbf16>
    %173 = vector.shape_cast %172 : vector<1x4x324xbf16> to vector<4x324xbf16>
    %c32_159 = arith.constant 32 : index
    %c0_160 = arith.constant 0 : index
    %174 = vector.load %arg8[%c32_159, %c0_160] : memref<72x324xbf16, #tpu.memory_space<vmem>>, vector<4x324xbf16>
    tpu.vector_store %arg8[%c32_159, %c0_160], %173 {strides = array<i32>} : memref<72x324xbf16, #tpu.memory_space<vmem>>, vector<4x324xbf16>,
    %c0_161 = arith.constant 0 : index
    %c0_162 = arith.constant 0 : index
    %c20_163 = arith.constant 20 : index
    %175 = vector.load %arg7[%c0_161, %c0_162, %c20_163] : memref<1x4x362xbf16, #tpu.memory_space<vmem>>, vector<1x4x324xbf16>
    %176 = vector.shape_cast %175 : vector<1x4x324xbf16> to vector<4x324xbf16>
    %c40_164 = arith.constant 40 : index
    %c0_165 = arith.constant 0 : index
    %177 = vector.load %arg8[%c40_164, %c0_165] : memref<72x324xbf16, #tpu.memory_space<vmem>>, vector<4x324xbf16>
    tpu.vector_store %arg8[%c40_164, %c0_165], %176 {strides = array<i32>} : memref<72x324xbf16, #tpu.memory_space<vmem>>, vector<4x324xbf16>,
    %c0_166 = arith.constant 0 : index
    %c0_167 = arith.constant 0 : index
    %c36_168 = arith.constant 36 : index
    %178 = vector.load %arg7[%c0_166, %c0_167, %c36_168] : memref<1x4x362xbf16, #tpu.memory_space<vmem>>, vector<1x4x324xbf16>
    %179 = vector.shape_cast %178 : vector<1x4x324xbf16> to vector<4x324xbf16>
    %c48_169 = arith.constant 48 : index
    %c0_170 = arith.constant 0 : index
    %180 = vector.load %arg8[%c48_169, %c0_170] : memref<72x324xbf16, #tpu.memory_space<vmem>>, vector<4x324xbf16>
    tpu.vector_store %arg8[%c48_169, %c0_170], %179 {strides = array<i32>} : memref<72x324xbf16, #tpu.memory_space<vmem>>, vector<4x324xbf16>,
    %c0_171 = arith.constant 0 : index
    %c0_172 = arith.constant 0 : index
    %c37_173 = arith.constant 37 : index
    %181 = vector.load %arg7[%c0_171, %c0_172, %c37_173] : memref<1x4x362xbf16, #tpu.memory_space<vmem>>, vector<1x4x324xbf16>
    %182 = vector.shape_cast %181 : vector<1x4x324xbf16> to vector<4x324xbf16>
    %c56_174 = arith.constant 56 : index
    %c0_175 = arith.constant 0 : index
    %183 = vector.load %arg8[%c56_174, %c0_175] : memref<72x324xbf16, #tpu.memory_space<vmem>>, vector<4x324xbf16>
    tpu.vector_store %arg8[%c56_174, %c0_175], %182 {strides = array<i32>} : memref<72x324xbf16, #tpu.memory_space<vmem>>, vector<4x324xbf16>,
    %c0_176 = arith.constant 0 : index
    %c0_177 = arith.constant 0 : index
    %c38_178 = arith.constant 38 : index
    %184 = vector.load %arg7[%c0_176, %c0_177, %c38_178] : memref<1x4x362xbf16, #tpu.memory_space<vmem>>, vector<1x4x324xbf16>
    %185 = vector.shape_cast %184 : vector<1x4x324xbf16> to vector<4x324xbf16>
    %c64_179 = arith.constant 64 : index
    %c0_180 = arith.constant 0 : index
    %186 = vector.load %arg8[%c64_179, %c0_180] : memref<72x324xbf16, #tpu.memory_space<vmem>>, vector<4x324xbf16>
    tpu.vector_store %arg8[%c64_179, %c0_180], %185 {strides = array<i32>} : memref<72x324xbf16, #tpu.memory_space<vmem>>, vector<4x324xbf16>,
    %c0_181 = arith.constant 0 : index
    %c72 = arith.constant 72 : index
    %187 = vector.load %arg2[%c0_181, %c72] : memref<4x144xbf16, #tpu.memory_space<vmem>>, vector<4x72xbf16>
    %c0_182 = arith.constant 0 : index
    %c0_183 = arith.constant 0 : index
    %188 = vector.load %arg8[%c0_182, %c0_183] : memref<72x324xbf16, #tpu.memory_space<vmem>>, vector<72x324xbf16>
    %cst_184 = arith.constant dense<0.000000e+00> : vector<4x324xf32>
    %189 = tpu.matmul %187, %188, %cst_184 {dimension_numbers = #tpu.dot_dimension_numbers<[1], [0], [0], [1], [0, 0, 1, 1], [], []>} : vector<4x72xbf16>, vector<72x324xbf16>, vector<4x324xf32> -> vector<4x324xf32>
    %c0_185 = arith.constant 0 : index
    %c2_186 = arith.constant 2 : index
    %190 = vector.load %arg3[%c0_185, %c2_186] : memref<4x4xf32, #tpu.memory_space<vmem>>, vector<4x1xf32>
    %c0_187 = arith.constant 0 : index
    %c3 = arith.constant 3 : index
    %191 = vector.load %arg3[%c0_187, %c3] : memref<4x4xf32, #tpu.memory_space<vmem>>, vector<4x1xf32>
    %192 = vector.broadcast %190 : vector<4x1xf32> to vector<4x324xf32>
    %193 = arith.mulf %189, %192 : vector<4x324xf32>
    %194 = vector.broadcast %191 : vector<4x1xf32> to vector<4x324xf32>
    %195 = arith.addf %193, %194 : vector<4x324xf32>
    %196 = vector.extract_strided_slice %195 {offsets = [0, 19], sizes = [4, 16], strides = [1, 1]} : vector<4x324xf32> to vector<4x16xf32>
    %c0_188 = arith.constant 0 : index
    %c0_189 = arith.constant 0 : index
    %c0_190 = arith.constant 0 : index
    %197 = vector.load %arg1[%c0_188, %c0_189, %c0_190] : memref<1x4x256xf32, #tpu.memory_space<vmem>>, vector<1x4x16xf32>
    %198 = vector.shape_cast %197 : vector<1x4x16xf32> to vector<4x16xf32>
    %199 = arith.addf %196, %198 : vector<4x16xf32>
    %cst_191 = arith.constant 0.000000e+00 : f32
    %200 = vector.broadcast %cst_191 : f32 to vector<4x16xf32>
    %201 = arith.maximumf %199, %200 : vector<4x16xf32>
    %c0_192 = arith.constant 0 : index
    %c0_193 = arith.constant 0 : index
    %c0_194 = arith.constant 0 : index
    %202 = vector.load %arg5[%c0_192, %c0_193, %c0_194] : memref<1x4x256xf32, #tpu.memory_space<vmem>>, vector<1x4x16xf32>
    %203 = vector.shape_cast %202 : vector<1x4x16xf32> to vector<4x16xf32>
    %204 = vector.shape_cast %201 : vector<4x16xf32> to vector<1x4x16xf32>
    tpu.vector_store %arg5[%c0_192, %c0_193, %c0_194], %204 {strides = array<i32>} : memref<1x4x256xf32, #tpu.memory_space<vmem>>, vector<1x4x16xf32>,
    %205 = vector.extract_strided_slice %195 {offsets = [0, 37], sizes = [4, 16], strides = [1, 1]} : vector<4x324xf32> to vector<4x16xf32>
    %c0_195 = arith.constant 0 : index
    %c0_196 = arith.constant 0 : index
    %c16_197 = arith.constant 16 : index
    %206 = vector.load %arg1[%c0_195, %c0_196, %c16_197] : memref<1x4x256xf32, #tpu.memory_space<vmem>>, vector<1x4x16xf32>
    %207 = vector.shape_cast %206 : vector<1x4x16xf32> to vector<4x16xf32>
    %208 = arith.addf %205, %207 : vector<4x16xf32>
    %cst_198 = arith.constant 0.000000e+00 : f32
    %209 = vector.broadcast %cst_198 : f32 to vector<4x16xf32>
    %210 = arith.maximumf %208, %209 : vector<4x16xf32>
    %c0_199 = arith.constant 0 : index
    %c0_200 = arith.constant 0 : index
    %c16_201 = arith.constant 16 : index
    %211 = vector.load %arg5[%c0_199, %c0_200, %c16_201] : memref<1x4x256xf32, #tpu.memory_space<vmem>>, vector<1x4x16xf32>
    %212 = vector.shape_cast %211 : vector<1x4x16xf32> to vector<4x16xf32>
    %213 = vector.shape_cast %210 : vector<4x16xf32> to vector<1x4x16xf32>
    tpu.vector_store %arg5[%c0_199, %c0_200, %c16_201], %213 {strides = array<i32>} : memref<1x4x256xf32, #tpu.memory_space<vmem>>, vector<1x4x16xf32>,
    %214 = vector.extract_strided_slice %195 {offsets = [0, 55], sizes = [4, 16], strides = [1, 1]} : vector<4x324xf32> to vector<4x16xf32>
    %c0_202 = arith.constant 0 : index
    %c0_203 = arith.constant 0 : index
    %c32_204 = arith.constant 32 : index
    %215 = vector.load %arg1[%c0_202, %c0_203, %c32_204] : memref<1x4x256xf32, #tpu.memory_space<vmem>>, vector<1x4x16xf32>
    %216 = vector.shape_cast %215 : vector<1x4x16xf32> to vector<4x16xf32>
    %217 = arith.addf %214, %216 : vector<4x16xf32>
    %cst_205 = arith.constant 0.000000e+00 : f32
    %218 = vector.broadcast %cst_205 : f32 to vector<4x16xf32>
    %219 = arith.maximumf %217, %218 : vector<4x16xf32>
    %c0_206 = arith.constant 0 : index
    %c0_207 = arith.constant 0 : index
    %c32_208 = arith.constant 32 : index
    %220 = vector.load %arg5[%c0_206, %c0_207, %c32_208] : memref<1x4x256xf32, #tpu.memory_space<vmem>>, vector<1x4x16xf32>
    %221 = vector.shape_cast %220 : vector<1x4x16xf32> to vector<4x16xf32>
    %222 = vector.shape_cast %219 : vector<4x16xf32> to vector<1x4x16xf32>
    tpu.vector_store %arg5[%c0_206, %c0_207, %c32_208], %222 {strides = array<i32>} : memref<1x4x256xf32, #tpu.memory_space<vmem>>, vector<1x4x16xf32>,
    %223 = vector.extract_strided_slice %195 {offsets = [0, 73], sizes = [4, 16], strides = [1, 1]} : vector<4x324xf32> to vector<4x16xf32>
    %c0_209 = arith.constant 0 : index
    %c0_210 = arith.constant 0 : index
    %c48_211 = arith.constant 48 : index
    %224 = vector.load %arg1[%c0_209, %c0_210, %c48_211] : memref<1x4x256xf32, #tpu.memory_space<vmem>>, vector<1x4x16xf32>
    %225 = vector.shape_cast %224 : vector<1x4x16xf32> to vector<4x16xf32>
    %226 = arith.addf %223, %225 : vector<4x16xf32>
    %cst_212 = arith.constant 0.000000e+00 : f32
    %227 = vector.broadcast %cst_212 : f32 to vector<4x16xf32>
    %228 = arith.maximumf %226, %227 : vector<4x16xf32>
    %c0_213 = arith.constant 0 : index
    %c0_214 = arith.constant 0 : index
    %c48_215 = arith.constant 48 : index
    %229 = vector.load %arg5[%c0_213, %c0_214, %c48_215] : memref<1x4x256xf32, #tpu.memory_space<vmem>>, vector<1x4x16xf32>
    %230 = vector.shape_cast %229 : vector<1x4x16xf32> to vector<4x16xf32>
    %231 = vector.shape_cast %228 : vector<4x16xf32> to vector<1x4x16xf32>
    tpu.vector_store %arg5[%c0_213, %c0_214, %c48_215], %231 {strides = array<i32>} : memref<1x4x256xf32, #tpu.memory_space<vmem>>, vector<1x4x16xf32>,
    %232 = vector.extract_strided_slice %195 {offsets = [0, 91], sizes = [4, 16], strides = [1, 1]} : vector<4x324xf32> to vector<4x16xf32>
    %c0_216 = arith.constant 0 : index
    %c0_217 = arith.constant 0 : index
    %c64_218 = arith.constant 64 : index
    %233 = vector.load %arg1[%c0_216, %c0_217, %c64_218] : memref<1x4x256xf32, #tpu.memory_space<vmem>>, vector<1x4x16xf32>
    %234 = vector.shape_cast %233 : vector<1x4x16xf32> to vector<4x16xf32>
    %235 = arith.addf %232, %234 : vector<4x16xf32>
    %cst_219 = arith.constant 0.000000e+00 : f32
    %236 = vector.broadcast %cst_219 : f32 to vector<4x16xf32>
    %237 = arith.maximumf %235, %236 : vector<4x16xf32>
    %c0_220 = arith.constant 0 : index
    %c0_221 = arith.constant 0 : index
    %c64_222 = arith.constant 64 : index
    %238 = vector.load %arg5[%c0_220, %c0_221, %c64_222] : memref<1x4x256xf32, #tpu.memory_space<vmem>>, vector<1x4x16xf32>
    %239 = vector.shape_cast %238 : vector<1x4x16xf32> to vector<4x16xf32>
    %240 = vector.shape_cast %237 : vector<4x16xf32> to vector<1x4x16xf32>
    tpu.vector_store %arg5[%c0_220, %c0_221, %c64_222], %240 {strides = array<i32>} : memref<1x4x256xf32, #tpu.memory_space<vmem>>, vector<1x4x16xf32>,
    %241 = vector.extract_strided_slice %195 {offsets = [0, 109], sizes = [4, 16], strides = [1, 1]} : vector<4x324xf32> to vector<4x16xf32>
    %c0_223 = arith.constant 0 : index
    %c0_224 = arith.constant 0 : index
    %c80_225 = arith.constant 80 : index
    %242 = vector.load %arg1[%c0_223, %c0_224, %c80_225] : memref<1x4x256xf32, #tpu.memory_space<vmem>>, vector<1x4x16xf32>
    %243 = vector.shape_cast %242 : vector<1x4x16xf32> to vector<4x16xf32>
    %244 = arith.addf %241, %243 : vector<4x16xf32>
    %cst_226 = arith.constant 0.000000e+00 : f32
    %245 = vector.broadcast %cst_226 : f32 to vector<4x16xf32>
    %246 = arith.maximumf %244, %245 : vector<4x16xf32>
    %c0_227 = arith.constant 0 : index
    %c0_228 = arith.constant 0 : index
    %c80_229 = arith.constant 80 : index
    %247 = vector.load %arg5[%c0_227, %c0_228, %c80_229] : memref<1x4x256xf32, #tpu.memory_space<vmem>>, vector<1x4x16xf32>
    %248 = vector.shape_cast %247 : vector<1x4x16xf32> to vector<4x16xf32>
    %249 = vector.shape_cast %246 : vector<4x16xf32> to vector<1x4x16xf32>
    tpu.vector_store %arg5[%c0_227, %c0_228, %c80_229], %249 {strides = array<i32>} : memref<1x4x256xf32, #tpu.memory_space<vmem>>, vector<1x4x16xf32>,
    %250 = vector.extract_strided_slice %195 {offsets = [0, 127], sizes = [4, 16], strides = [1, 1]} : vector<4x324xf32> to vector<4x16xf32>
    %c0_230 = arith.constant 0 : index
    %c0_231 = arith.constant 0 : index
    %c96_232 = arith.constant 96 : index
    %251 = vector.load %arg1[%c0_230, %c0_231, %c96_232] : memref<1x4x256xf32, #tpu.memory_space<vmem>>, vector<1x4x16xf32>
    %252 = vector.shape_cast %251 : vector<1x4x16xf32> to vector<4x16xf32>
    %253 = arith.addf %250, %252 : vector<4x16xf32>
    %cst_233 = arith.constant 0.000000e+00 : f32
    %254 = vector.broadcast %cst_233 : f32 to vector<4x16xf32>
    %255 = arith.maximumf %253, %254 : vector<4x16xf32>
    %c0_234 = arith.constant 0 : index
    %c0_235 = arith.constant 0 : index
    %c96_236 = arith.constant 96 : index
    %256 = vector.load %arg5[%c0_234, %c0_235, %c96_236] : memref<1x4x256xf32, #tpu.memory_space<vmem>>, vector<1x4x16xf32>
    %257 = vector.shape_cast %256 : vector<1x4x16xf32> to vector<4x16xf32>
    %258 = vector.shape_cast %255 : vector<4x16xf32> to vector<1x4x16xf32>
    tpu.vector_store %arg5[%c0_234, %c0_235, %c96_236], %258 {strides = array<i32>} : memref<1x4x256xf32, #tpu.memory_space<vmem>>, vector<1x4x16xf32>,
    %259 = vector.extract_strided_slice %195 {offsets = [0, 145], sizes = [4, 16], strides = [1, 1]} : vector<4x324xf32> to vector<4x16xf32>
    %c0_237 = arith.constant 0 : index
    %c0_238 = arith.constant 0 : index
    %c112_239 = arith.constant 112 : index
    %260 = vector.load %arg1[%c0_237, %c0_238, %c112_239] : memref<1x4x256xf32, #tpu.memory_space<vmem>>, vector<1x4x16xf32>
    %261 = vector.shape_cast %260 : vector<1x4x16xf32> to vector<4x16xf32>
    %262 = arith.addf %259, %261 : vector<4x16xf32>
    %cst_240 = arith.constant 0.000000e+00 : f32
    %263 = vector.broadcast %cst_240 : f32 to vector<4x16xf32>
    %264 = arith.maximumf %262, %263 : vector<4x16xf32>
    %c0_241 = arith.constant 0 : index
    %c0_242 = arith.constant 0 : index
    %c112_243 = arith.constant 112 : index
    %265 = vector.load %arg5[%c0_241, %c0_242, %c112_243] : memref<1x4x256xf32, #tpu.memory_space<vmem>>, vector<1x4x16xf32>
    %266 = vector.shape_cast %265 : vector<1x4x16xf32> to vector<4x16xf32>
    %267 = vector.shape_cast %264 : vector<4x16xf32> to vector<1x4x16xf32>
    tpu.vector_store %arg5[%c0_241, %c0_242, %c112_243], %267 {strides = array<i32>} : memref<1x4x256xf32, #tpu.memory_space<vmem>>, vector<1x4x16xf32>,
    %268 = vector.extract_strided_slice %195 {offsets = [0, 163], sizes = [4, 16], strides = [1, 1]} : vector<4x324xf32> to vector<4x16xf32>
    %c0_244 = arith.constant 0 : index
    %c0_245 = arith.constant 0 : index
    %c128_246 = arith.constant 128 : index
    %269 = vector.load %arg1[%c0_244, %c0_245, %c128_246] : memref<1x4x256xf32, #tpu.memory_space<vmem>>, vector<1x4x16xf32>
    %270 = vector.shape_cast %269 : vector<1x4x16xf32> to vector<4x16xf32>
    %271 = arith.addf %268, %270 : vector<4x16xf32>
    %cst_247 = arith.constant 0.000000e+00 : f32
    %272 = vector.broadcast %cst_247 : f32 to vector<4x16xf32>
    %273 = arith.maximumf %271, %272 : vector<4x16xf32>
    %c0_248 = arith.constant 0 : index
    %c0_249 = arith.constant 0 : index
    %c128_250 = arith.constant 128 : index
    %274 = vector.load %arg5[%c0_248, %c0_249, %c128_250] : memref<1x4x256xf32, #tpu.memory_space<vmem>>, vector<1x4x16xf32>
    %275 = vector.shape_cast %274 : vector<1x4x16xf32> to vector<4x16xf32>
    %276 = vector.shape_cast %273 : vector<4x16xf32> to vector<1x4x16xf32>
    tpu.vector_store %arg5[%c0_248, %c0_249, %c128_250], %276 {strides = array<i32>} : memref<1x4x256xf32, #tpu.memory_space<vmem>>, vector<1x4x16xf32>,
    %277 = vector.extract_strided_slice %195 {offsets = [0, 181], sizes = [4, 16], strides = [1, 1]} : vector<4x324xf32> to vector<4x16xf32>
    %c0_251 = arith.constant 0 : index
    %c0_252 = arith.constant 0 : index
    %c144_253 = arith.constant 144 : index
    %278 = vector.load %arg1[%c0_251, %c0_252, %c144_253] : memref<1x4x256xf32, #tpu.memory_space<vmem>>, vector<1x4x16xf32>
    %279 = vector.shape_cast %278 : vector<1x4x16xf32> to vector<4x16xf32>
    %280 = arith.addf %277, %279 : vector<4x16xf32>
    %cst_254 = arith.constant 0.000000e+00 : f32
    %281 = vector.broadcast %cst_254 : f32 to vector<4x16xf32>
    %282 = arith.maximumf %280, %281 : vector<4x16xf32>
    %c0_255 = arith.constant 0 : index
    %c0_256 = arith.constant 0 : index
    %c144_257 = arith.constant 144 : index
    %283 = vector.load %arg5[%c0_255, %c0_256, %c144_257] : memref<1x4x256xf32, #tpu.memory_space<vmem>>, vector<1x4x16xf32>
    %284 = vector.shape_cast %283 : vector<1x4x16xf32> to vector<4x16xf32>
    %285 = vector.shape_cast %282 : vector<4x16xf32> to vector<1x4x16xf32>
    tpu.vector_store %arg5[%c0_255, %c0_256, %c144_257], %285 {strides = array<i32>} : memref<1x4x256xf32, #tpu.memory_space<vmem>>, vector<1x4x16xf32>,
    %286 = vector.extract_strided_slice %195 {offsets = [0, 199], sizes = [4, 16], strides = [1, 1]} : vector<4x324xf32> to vector<4x16xf32>
    %c0_258 = arith.constant 0 : index
    %c0_259 = arith.constant 0 : index
    %c160_260 = arith.constant 160 : index
    %287 = vector.load %arg1[%c0_258, %c0_259, %c160_260] : memref<1x4x256xf32, #tpu.memory_space<vmem>>, vector<1x4x16xf32>
    %288 = vector.shape_cast %287 : vector<1x4x16xf32> to vector<4x16xf32>
    %289 = arith.addf %286, %288 : vector<4x16xf32>
    %cst_261 = arith.constant 0.000000e+00 : f32
    %290 = vector.broadcast %cst_261 : f32 to vector<4x16xf32>
    %291 = arith.maximumf %289, %290 : vector<4x16xf32>
    %c0_262 = arith.constant 0 : index
    %c0_263 = arith.constant 0 : index
    %c160_264 = arith.constant 160 : index
    %292 = vector.load %arg5[%c0_262, %c0_263, %c160_264] : memref<1x4x256xf32, #tpu.memory_space<vmem>>, vector<1x4x16xf32>
    %293 = vector.shape_cast %292 : vector<1x4x16xf32> to vector<4x16xf32>
    %294 = vector.shape_cast %291 : vector<4x16xf32> to vector<1x4x16xf32>
    tpu.vector_store %arg5[%c0_262, %c0_263, %c160_264], %294 {strides = array<i32>} : memref<1x4x256xf32, #tpu.memory_space<vmem>>, vector<1x4x16xf32>,
    %295 = vector.extract_strided_slice %195 {offsets = [0, 217], sizes = [4, 16], strides = [1, 1]} : vector<4x324xf32> to vector<4x16xf32>
    %c0_265 = arith.constant 0 : index
    %c0_266 = arith.constant 0 : index
    %c176_267 = arith.constant 176 : index
    %296 = vector.load %arg1[%c0_265, %c0_266, %c176_267] : memref<1x4x256xf32, #tpu.memory_space<vmem>>, vector<1x4x16xf32>
    %297 = vector.shape_cast %296 : vector<1x4x16xf32> to vector<4x16xf32>
    %298 = arith.addf %295, %297 : vector<4x16xf32>
    %cst_268 = arith.constant 0.000000e+00 : f32
    %299 = vector.broadcast %cst_268 : f32 to vector<4x16xf32>
    %300 = arith.maximumf %298, %299 : vector<4x16xf32>
    %c0_269 = arith.constant 0 : index
    %c0_270 = arith.constant 0 : index
    %c176_271 = arith.constant 176 : index
    %301 = vector.load %arg5[%c0_269, %c0_270, %c176_271] : memref<1x4x256xf32, #tpu.memory_space<vmem>>, vector<1x4x16xf32>
    %302 = vector.shape_cast %301 : vector<1x4x16xf32> to vector<4x16xf32>
    %303 = vector.shape_cast %300 : vector<4x16xf32> to vector<1x4x16xf32>
    tpu.vector_store %arg5[%c0_269, %c0_270, %c176_271], %303 {strides = array<i32>} : memref<1x4x256xf32, #tpu.memory_space<vmem>>, vector<1x4x16xf32>,
    %304 = vector.extract_strided_slice %195 {offsets = [0, 235], sizes = [4, 16], strides = [1, 1]} : vector<4x324xf32> to vector<4x16xf32>
    %c0_272 = arith.constant 0 : index
    %c0_273 = arith.constant 0 : index
    %c192_274 = arith.constant 192 : index
    %305 = vector.load %arg1[%c0_272, %c0_273, %c192_274] : memref<1x4x256xf32, #tpu.memory_space<vmem>>, vector<1x4x16xf32>
    %306 = vector.shape_cast %305 : vector<1x4x16xf32> to vector<4x16xf32>
    %307 = arith.addf %304, %306 : vector<4x16xf32>
    %cst_275 = arith.constant 0.000000e+00 : f32
    %308 = vector.broadcast %cst_275 : f32 to vector<4x16xf32>
    %309 = arith.maximumf %307, %308 : vector<4x16xf32>
    %c0_276 = arith.constant 0 : index
    %c0_277 = arith.constant 0 : index
    %c192_278 = arith.constant 192 : index
    %310 = vector.load %arg5[%c0_276, %c0_277, %c192_278] : memref<1x4x256xf32, #tpu.memory_space<vmem>>, vector<1x4x16xf32>
    %311 = vector.shape_cast %310 : vector<1x4x16xf32> to vector<4x16xf32>
    %312 = vector.shape_cast %309 : vector<4x16xf32> to vector<1x4x16xf32>
    tpu.vector_store %arg5[%c0_276, %c0_277, %c192_278], %312 {strides = array<i32>} : memref<1x4x256xf32, #tpu.memory_space<vmem>>, vector<1x4x16xf32>,
    %313 = vector.extract_strided_slice %195 {offsets = [0, 253], sizes = [4, 16], strides = [1, 1]} : vector<4x324xf32> to vector<4x16xf32>
    %c0_279 = arith.constant 0 : index
    %c0_280 = arith.constant 0 : index
    %c208_281 = arith.constant 208 : index
    %314 = vector.load %arg1[%c0_279, %c0_280, %c208_281] : memref<1x4x256xf32, #tpu.memory_space<vmem>>, vector<1x4x16xf32>
    %315 = vector.shape_cast %314 : vector<1x4x16xf32> to vector<4x16xf32>
    %316 = arith.addf %313, %315 : vector<4x16xf32>
    %cst_282 = arith.constant 0.000000e+00 : f32
    %317 = vector.broadcast %cst_282 : f32 to vector<4x16xf32>
    %318 = arith.maximumf %316, %317 : vector<4x16xf32>
    %c0_283 = arith.constant 0 : index
    %c0_284 = arith.constant 0 : index
    %c208_285 = arith.constant 208 : index
    %319 = vector.load %arg5[%c0_283, %c0_284, %c208_285] : memref<1x4x256xf32, #tpu.memory_space<vmem>>, vector<1x4x16xf32>
    %320 = vector.shape_cast %319 : vector<1x4x16xf32> to vector<4x16xf32>
    %321 = vector.shape_cast %318 : vector<4x16xf32> to vector<1x4x16xf32>
    tpu.vector_store %arg5[%c0_283, %c0_284, %c208_285], %321 {strides = array<i32>} : memref<1x4x256xf32, #tpu.memory_space<vmem>>, vector<1x4x16xf32>,
    %322 = vector.extract_strided_slice %195 {offsets = [0, 271], sizes = [4, 16], strides = [1, 1]} : vector<4x324xf32> to vector<4x16xf32>
    %c0_286 = arith.constant 0 : index
    %c0_287 = arith.constant 0 : index
    %c224_288 = arith.constant 224 : index
    %323 = vector.load %arg1[%c0_286, %c0_287, %c224_288] : memref<1x4x256xf32, #tpu.memory_space<vmem>>, vector<1x4x16xf32>
    %324 = vector.shape_cast %323 : vector<1x4x16xf32> to vector<4x16xf32>
    %325 = arith.addf %322, %324 : vector<4x16xf32>
    %cst_289 = arith.constant 0.000000e+00 : f32
    %326 = vector.broadcast %cst_289 : f32 to vector<4x16xf32>
    %327 = arith.maximumf %325, %326 : vector<4x16xf32>
    %c0_290 = arith.constant 0 : index
    %c0_291 = arith.constant 0 : index
    %c224_292 = arith.constant 224 : index
    %328 = vector.load %arg5[%c0_290, %c0_291, %c224_292] : memref<1x4x256xf32, #tpu.memory_space<vmem>>, vector<1x4x16xf32>
    %329 = vector.shape_cast %328 : vector<1x4x16xf32> to vector<4x16xf32>
    %330 = vector.shape_cast %327 : vector<4x16xf32> to vector<1x4x16xf32>
    tpu.vector_store %arg5[%c0_290, %c0_291, %c224_292], %330 {strides = array<i32>} : memref<1x4x256xf32, #tpu.memory_space<vmem>>, vector<1x4x16xf32>,
    %331 = vector.extract_strided_slice %195 {offsets = [0, 289], sizes = [4, 16], strides = [1, 1]} : vector<4x324xf32> to vector<4x16xf32>
    %c0_293 = arith.constant 0 : index
    %c0_294 = arith.constant 0 : index
    %c240_295 = arith.constant 240 : index
    %332 = vector.load %arg1[%c0_293, %c0_294, %c240_295] : memref<1x4x256xf32, #tpu.memory_space<vmem>>, vector<1x4x16xf32>
    %333 = vector.shape_cast %332 : vector<1x4x16xf32> to vector<4x16xf32>
    %334 = arith.addf %331, %333 : vector<4x16xf32>
    %cst_296 = arith.constant 0.000000e+00 : f32
    %335 = vector.broadcast %cst_296 : f32 to vector<4x16xf32>
    %336 = arith.maximumf %334, %335 : vector<4x16xf32>
    %c0_297 = arith.constant 0 : index
    %c0_298 = arith.constant 0 : index
    %c240_299 = arith.constant 240 : index
    %337 = vector.load %arg5[%c0_297, %c0_298, %c240_299] : memref<1x4x256xf32, #tpu.memory_space<vmem>>, vector<1x4x16xf32>
    %338 = vector.shape_cast %337 : vector<1x4x16xf32> to vector<4x16xf32>
    %339 = vector.shape_cast %336 : vector<4x16xf32> to vector<1x4x16xf32>
    tpu.vector_store %arg5[%c0_297, %c0_298, %c240_299], %339 {strides = array<i32>} : memref<1x4x256xf32, #tpu.memory_space<vmem>>, vector<1x4x16xf32>,
    return
  }
  func.func @transform_0(%arg0: i32) -> (i32, i32, i32) {
    %c0_i32 = arith.constant 0 : i32
    %c0_i32_0 = arith.constant 0 : i32
    %c0_i32_1 = arith.constant 0 : i32
    return %arg0, %c0_i32, %c0_i32_0 : i32, i32, i32
  }
  func.func @transform_1(%arg0: i32) -> (i32, i32) {
    %c0_i32 = arith.constant 0 : i32
    %c0_i32_0 = arith.constant 0 : i32
    %c0_i32_1 = arith.constant 0 : i32
    return %c0_i32, %c0_i32_0 : i32, i32
  }
  func.func @transform_2(%arg0: i32) -> (i32, i32) {
    %c0_i32 = arith.constant 0 : i32
    %c0_i32_0 = arith.constant 0 : i32
    %c0_i32_1 = arith.constant 0 : i32
    return %c0_i32, %c0_i32_0 : i32, i32
  }
  func.func @transform_3(%arg0: i32) -> (i32, i32) {
    %c0_i32 = arith.constant 0 : i32
    %c0_i32_0 = arith.constant 0 : i32
    %c0_i32_1 = arith.constant 0 : i32
    return %c0_i32, %c0_i32_0 : i32, i32
  }
  func.func @transform_4(%arg0: i32) -> (i32, i32, i32) {
    %c0_i32 = arith.constant 0 : i32
    %c0_i32_0 = arith.constant 0 : i32
    %c0_i32_1 = arith.constant 0 : i32
    return %arg0, %c0_i32, %c0_i32_0 : i32, i32, i32
  }
}

</mosaic_0001>

<llo_original>
// kernel: basic_block_forward.1
$region0: #{basic_block_forward.1}
  #allocation0 [shape = 'u32[]', space=smem, size = 0x4, offset = 0x4, fixed_abs, tag = 'smem constant byte address 0x4 - core index']
  #allocation1 [shape = 'u32[72,128]{1,0:T(1,128)}', space=vmem, size = 0x9000, scoped, tag = 'internal scratch']
  #allocation2 [shape = 'bf16[1,4,362]{2,1,0:T(4,128)(2,1)}', space=vmem, size = 0xc00, scoped, tag = 'scratch operand']
  #allocation3 [shape = 'bf16[1,4,362]{2,1,0:T(4,128)(2,1)}', space=vmem, size = 0xc00, scoped, tag = 'scratch operand']
  #allocation4 [shape = 'bf16[72,324]{1,0:T(8,128)(2,1)}', space=vmem, size = 0xd800, scoped, tag = 'scratch operand']
  %s0 = inlined_call_operand.vmem [shape: f32[2,4,256], index: 0, kind: input, shape index: {}]
  %s1 = inlined_call_operand.vmem [shape: bf16[4,144], index: 1, kind: input, shape index: {}]
  %s2 = inlined_call_operand.vmem [shape: f32[4,4], index: 2, kind: input, shape index: {}]
  %s3 = inlined_call_operand.vmem [shape: f32[1,324], index: 3, kind: input, shape index: {}]
  %s4 = inlined_call_operand.vmem [shape: f32[2,4,256], index: 4, kind: output, shape index: {}]
  %s5 = sld [smem:[#allocation0]]
  $region49: #{basic_block_forward.1} parent=0
    _
  %s7 = ssub.s32 1, %s5
  %s8 = scalar_select 0, %s7, %s5
  loop: start=0, step=1, limit=4
  $region2: #{basic_block_forward.1} parent=0 // loop_pre_header
    _
  $region3: #{basic_block_forward.1} parent=0 // loop_header
    %s10 = sphi 0, %s14
    %p11 = scmp.ge.s32.totalorder %s10, 4
    %s20 = sphi 0, %s22
    %s23 = sphi 0, %s20
    %s24 = sphi 0, %s23
    %s40 = sphi 0, %s24
    %s44 = sphi 0, %s44
    %s46 = sphi 0, %s44
    %s47 = sphi 0, %s46
    %s61 = sphi 0, %s47
    %s65 = sphi 0, %s65
    %s67 = sphi 0, %s65
    %s68 = sphi 0, %s67
    %s82 = sphi 0, %s68
    %s86 = sphi 0, %s86
    %s88 = sphi 0, %s86
    %s89 = sphi 0, %s88
    %s103 = sphi 0, %s89
    %s109 = sphi 0, %s111
    %s112 = sphi 0, %s109
    %s113 = sphi 0, %s112
    %s129 = sphi 0, %s113
  $region4: #{basic_block_forward.1} parent=0 // loop_header_branch
    %13 = sbr.rel (%p11) target = $region8
  $region5: #{basic_block_forward.1} parent=0 // loop_body
    %s15 = ssub.s32 %s10, 1
    %s16 = ssub.s32 %s10, 2
    %s17 = sadd.s32 %s10, 1
    %s18 = ssub.s32 %s10, %s17
    %p19 = scmp.eq.s32.totalorder %s18, 0
    %s21 = sadd.s32 %s20, 1
    %s22 = scalar_select %p19, %s20, %s21
    %p25 = pneg %p19
    %p26 = scmp.eq.s32.totalorder %s10, 1
    %p27 = por %p25, %p26
    %p28 = scmp.ne.s32.totalorder %s20, %s23
    %p29 = scmp.eq.s32.totalorder %s10, 0
    %p30 = por %p28, %p29
    %p31 = scmp.ne.s32.totalorder %s20, %s23
    %p32 = scmp.eq.s32.totalorder %s15, 1
    %p33 = por %p31, %p32
    %p34 = scmp.ne.s32.totalorder %s23, %s24
    %p35 = scmp.eq.s32.totalorder %s15, 0
    %p36 = por %p34, %p35
    %p37 = scmp.ne.s32.totalorder %s23, %s24
    %p38 = scmp.eq.s32.totalorder %s16, 1
    %p39 = por %p37, %p38
    %p41 = scmp.ne.s32.totalorder %s24, %s40
    %p42 = scmp.eq.s32.totalorder %s16, 0
    %p43 = por %p41, %p42
    %s45 = sadd.s32 %s44, 1
    %p48 = scmp.eq.s32.totalorder %s10, 1
    %p49 = scmp.ne.s32.totalorder %s44, %s46
    %p50 = scmp.eq.s32.totalorder %s10, 0
    %p51 = por %p49, %p50
    %p52 = scmp.ne.s32.totalorder %s44, %s46
    %p53 = scmp.eq.s32.totalorder %s15, 1
    %p54 = por %p52, %p53
    %p55 = scmp.ne.s32.totalorder %s46, %s47
    %p56 = scmp.eq.s32.totalorder %s15, 0
    %p57 = por %p55, %p56
    %p58 = scmp.ne.s32.totalorder %s46, %s47
    %p59 = scmp.eq.s32.totalorder %s16, 1
    %p60 = por %p58, %p59
    %p62 = scmp.ne.s32.totalorder %s47, %s61
    %p63 = scmp.eq.s32.totalorder %s16, 0
    %p64 = por %p62, %p63
    %s66 = sadd.s32 %s65, 1
    %p69 = scmp.eq.s32.totalorder %s10, 1
    %p70 = scmp.ne.s32.totalorder %s65, %s67
    %p71 = scmp.eq.s32.totalorder %s10, 0
    %p72 = por %p70, %p71
    %p73 = scmp.ne.s32.totalorder %s65, %s67
    %p74 = scmp.eq.s32.totalorder %s15, 1
    %p75 = por %p73, %p74
    %p76 = scmp.ne.s32.totalorder %s67, %s68
    %p77 = scmp.eq.s32.totalorder %s15, 0
    %p78 = por %p76, %p77
    %p79 = scmp.ne.s32.totalorder %s67, %s68
    %p80 = scmp.eq.s32.totalorder %s16, 1
    %p81 = por %p79, %p80
    %p83 = scmp.ne.s32.totalorder %s68, %s82
    %p84 = scmp.eq.s32.totalorder %s16, 0
    %p85 = por %p83, %p84
    %s87 = sadd.s32 %s86, 1
    %p90 = scmp.eq.s32.totalorder %s10, 1
    %p91 = scmp.ne.s32.totalorder %s86, %s88
    %p92 = scmp.eq.s32.totalorder %s10, 0
    %p93 = por %p91, %p92
    %p94 = scmp.ne.s32.totalorder %s86, %s88
    %p95 = scmp.eq.s32.totalorder %s15, 1
    %p96 = por %p94, %p95
    %p97 = scmp.ne.s32.totalorder %s88, %s89
    %p98 = scmp.eq.s32.totalorder %s15, 0
    %p99 = por %p97, %p98
    %p100 = scmp.ne.s32.totalorder %s88, %s89
    %p101 = scmp.eq.s32.totalorder %s16, 1
    %p102 = por %p100, %p101
    %p104 = scmp.ne.s32.totalorder %s89, %s103
    %p105 = scmp.eq.s32.totalorder %s16, 0
    %p106 = por %p104, %p105
    %s107 = ssub.s32 %s10, %s17
    %p108 = scmp.eq.s32.totalorder %s107, 0
    %s110 = sadd.s32 %s109, 1
    %s111 = scalar_select %p108, %s109, %s110
    %p114 = pneg %p108
    %p115 = scmp.eq.s32.totalorder %s10, 1
    %p116 = por %p114, %p115
    %p117 = scmp.ne.s32.totalorder %s109, %s112
    %p118 = scmp.eq.s32.totalorder %s10, 0
    %p119 = por %p117, %p118
    %p120 = scmp.ne.s32.totalorder %s109, %s112
    %p121 = scmp.eq.s32.totalorder %s15, 1
    %p122 = por %p120, %p121
    %p123 = scmp.ne.s32.totalorder %s112, %s113
    %p124 = scmp.eq.s32.totalorder %s15, 0
    %p125 = por %p123, %p124
    %p126 = scmp.ne.s32.totalorder %s112, %s113
    %p127 = scmp.eq.s32.totalorder %s16, 1
    %p128 = por %p126, %p127
    %p130 = scmp.ne.s32.totalorder %s113, %s129
    %p131 = scmp.eq.s32.totalorder %s16, 0
    %p132 = por %p130, %p131
    %p133 = scmp.le.s32.totalorder 1, %s10
    %p134 = scmp.lt.s32.totalorder %s10, 3
    %p135 = pnand %p133, %p134
    %p136 = pneg %p135
    // Predicated region
    $region9: #{basic_block_forward.1} parent=5 // pred_check
      _
    $region10: #{basic_block_forward.1} parent=5 // pred_check_branch
      %138 = sbr.rel (%p135) target = $region12
    $region11: #{basic_block_forward.1} parent=5 // pred_region
      %s139 = ssub.s32 %s10, 1
      // Predicated region
      $region13: #{basic_block_forward.1} parent=11 // pred_check
        %p140 = pneg %p57
      $region14: #{basic_block_forward.1} parent=11 // pred_check_branch
        %142 = sbr.rel (%p140) target = $region16
      $region15: #{basic_block_forward.1} parent=11 // pred_region
        _
      $region16: #{basic_block_forward.1} parent=11 // pred_fallthru
        _
      // Predicated region
      $region17: #{basic_block_forward.1} parent=11 // pred_check
        %p143 = pneg %p78
      $region18: #{basic_block_forward.1} parent=11 // pred_check_branch
        %145 = sbr.rel (%p143) target = $region20
      $region19: #{basic_block_forward.1} parent=11 // pred_region
        _
      $region20: #{basic_block_forward.1} parent=11 // pred_fallthru
        _
      // Predicated region
      $region21: #{basic_block_forward.1} parent=11 // pred_check
        %p146 = pneg %p99
      $region22: #{basic_block_forward.1} parent=11 // pred_check_branch
        %148 = sbr.rel (%p146) target = $region24
      $region23: #{basic_block_forward.1} parent=11 // pred_region
        _
      $region24: #{basic_block_forward.1} parent=11 // pred_fallthru
        _
    $region12: #{basic_block_forward.1} parent=5 // pred_fallthru
      _
    %p149 = scmp.lt.s32.totalorder %s10, 2
    // Predicated region
    $region25: #{basic_block_forward.1} parent=5 // pred_check
      %p150 = pneg %p149
    $region26: #{basic_block_forward.1} parent=5 // pred_check_branch
      %152 = sbr.rel (%p150) target = $region28
    $region27: #{basic_block_forward.1} parent=5 // pred_region
      // Predicated region
      $region29: #{basic_block_forward.1} parent=27 // pred_check
        %p153 = pneg %p30
      $region30: #{basic_block_forward.1} parent=27 // pred_check_branch
        %155 = sbr.rel (%p153) target = $region32
      $region31: #{basic_block_forward.1} parent=27 // pred_region
        %p156 = scmp.lt.s32.totalorder %s10, 1
        %s157 = scalar_select %p156, %s10, 1
        %s158 = smul.addr %s157, 2
        %s159 = smul.addr %s158, 4
        %s160 = scalar_lea.vmem %s0, %s159
      $region32: #{basic_block_forward.1} parent=27 // pred_fallthru
        _
    $region28: #{basic_block_forward.1} parent=5 // pred_fallthru
      _
    %p161 = scmp.le.s32.totalorder 1, %s10
    %p162 = scmp.lt.s32.totalorder %s10, 3
    %p163 = pnand %p161, %p162
    %p164 = pneg %p163
    // Predicated region
    $region33: #{basic_block_forward.1} parent=5 // pred_check
      _
    $region34: #{basic_block_forward.1} parent=5 // pred_check_branch
      %166 = sbr.rel (%p163) target = $region36
    $region35: #{basic_block_forward.1} parent=5 // pred_region
      %s167 = ssub.s32 %s10, 1
      %p168 = scmp.lt.s32.totalorder %s15, 1
      %s169 = scalar_select %p168, %s15, 1
      %s170 = smul.addr %s169, 2
      %s171 = smul.addr %s170, 4
      %s172 = scalar_lea.vmem %s0, %s171
      %p173 = pneg %p36
      %p174 = pneg %p33
      %p175 = pneg %p57
      %p176 = pneg %p54
      %p177 = pneg %p78
      %p178 = pneg %p75
      %p179 = pneg %p99
      %p180 = pneg %p96
      %p181 = pneg %p125
      %p182 = pneg %p122
      %p183 = scmp.lt.s32.totalorder %s15, 1
      %s184 = scalar_select %p183, %s15, 1
      %s185 = smul.addr %s184, 2
      %s186 = smul.addr %s185, 4
      %s187 = scalar_lea.vmem %s4, %s186
      %p188 = scmp.lt.s32.totalorder %s15, 1
      %s189 = scalar_select %p188, %s15, 1
      %s190 = smul.addr %s189, 2
      %s191 = smul.addr %s190, 4
      %s192 = scalar_lea.vmem %s0, %s191
      %p193 = scmp.lt.s32.totalorder %s15, 1
      %s194 = scalar_select %p193, %s15, 1
      %s195 = smul.addr %s194, 2
      %s196 = smul.addr %s195, 4
      %s197 = scalar_lea.vmem %s4, %s196
      %vm199 = vcmask 1041408
      %vm200 = vcmask 1043458
      %vm201 = vmor %vm200, %vm199
      %vm202 = vcmask 865284
      %vm203 = vmor %vm202, %vm201
      %204 = vst.msk [vmem:[#allocation2] sm:$0x3f] %vm203, 0
      %vm205 = vcmask 148480
      %206 = vst.msk [vmem:[#allocation3] sm:$0x3] %vm205, 0
      %vm207 = vcmask 861880
      %208 = vst.msk [vmem:[#allocation3 + $0x4] sm:$0x3] %vm207, 0
      %209 = vst [vmem:[#allocation4] sm:$0xcc] 0
      %vm210 = vcmask 551938
      %211 = vst.msk [vmem:[#allocation4 + $0x8] sm:$0xc] %vm210, 0
      %212 = vst [vmem:[#allocation4 + $0xc] sm:$0xcc] 0
      %213 = vst.msk [vmem:[#allocation4 + $0x14] sm:$0xc] %vm210, 0
      %214 = vst [vmem:[#allocation4 + $0x18] sm:$0xcc] 0
      %215 = vst.msk [vmem:[#allocation4 + $0x20] sm:$0xc] %vm210, 0
      %216 = vst [vmem:[#allocation4 + $0x24] sm:$0xcc] 0
      %217 = vst.msk [vmem:[#allocation4 + $0x2c] sm:$0xc] %vm210, 0
      %218 = vst [vmem:[#allocation4 + $0x30] sm:$0xcc] 0
      %219 = vst.msk [vmem:[#allocation4 + $0x38] sm:$0xc] %vm210, 0
      %220 = vst [vmem:[#allocation4 + $0x3c] sm:$0xcc] 0
      %221 = vst.msk [vmem:[#allocation4 + $0x44] sm:$0xc] %vm210, 0
      %222 = vst [vmem:[#allocation4 + $0x48] sm:$0xcc] 0
      %223 = vst.msk [vmem:[#allocation4 + $0x50] sm:$0xc] %vm210, 0
      %224 = vst [vmem:[#allocation4 + $0x54] sm:$0xcc] 0
      %225 = vst.msk [vmem:[#allocation4 + $0x5c] sm:$0xc] %vm210, 0
      %226 = vst [vmem:[#allocation4 + $0x60] sm:$0xcc] 0
      %227 = vst.msk [vmem:[#allocation4 + $0x68] sm:$0xc] %vm210, 0
      %v228 = vld [vmem:[%s192] sm:$0xf]
      %v229 = vpack.c.bf16 %v228, %v228
      %v231 = vrot.slane %v229, 2
      %v234 = vsel %vm199, %v229, %v231
      %236 = vrot.lane.b32.xlu0 %v234, 38
      %v237 = vpop.permute.xlu0 %236
      %vm239 = vcmask 435504
      %240 = vst.msk [vmem:[#allocation2] sm:$0x3] %vm239, %v237
      %v241 = vld [vmem:[%s192] sm:$0xf]
      %v242 = vpack.c.bf16 %v241, %v241
      %v244 = vrot.slane %v242, 2
      %v247 = vsel %vm199, %v242, %v244
      %249 = vrot.lane.b32.xlu0 %v247, 40
      %v250 = vpop.permute.xlu0 %249
      %vm252 = vcmask 583104
      %253 = vst.msk [vmem:[#allocation2] sm:$0x3] %vm252, %v250
      %v254 = vld [vmem:[%s192] sm:$0xf]
      %v255 = vpack.c.bf16 %v254, %v254
      %v257 = vrot.slane %v255, 2
      %v260 = vsel %vm199, %v255, %v257
      %262 = vrot.lane.b32.xlu0 %v260, 42
      %v263 = vpop.permute.xlu0 %262
      %vm265 = vcmask 730704
      %266 = vst.msk [vmem:[#allocation2] sm:$0x3] %vm265, %v263
      %v267 = vld [vmem:[%s192] sm:$0xf]
      %v268 = vpack.c.bf16 %v267, %v267
      %v270 = vrot.slane %v268, 2
      %v273 = vsel %vm199, %v268, %v270
      %275 = vrot.lane.b32.xlu0 %v273, 44
      %v276 = vpop.permute.xlu0 %275
      %vm278 = vcmask 878304
      %279 = vst.msk [vmem:[#allocation2] sm:$0x3] %vm278, %v276
      %v280 = vld [vmem:[%s192] sm:$0xf]
      %v281 = vpack.c.bf16 %v280, %v280
      %v283 = vrot.slane %v281, 2
      %v286 = vsel %vm199, %v281, %v283
      %288 = vrot.lane.b32.xlu0 %v286, 46
      %v289 = vpop.permute.xlu0 %288
      %vm291 = vcmask 1025904
      %292 = vst.msk [vmem:[#allocation2] sm:$0x3] %vm291, %v289
      %v293 = vld [vmem:[%s192] sm:$0xf]
      %v294 = vpack.c.bf16 %v293, %v293
      %v296 = vrot.slane %v294, 2
      %v299 = vsel %vm199, %v294, %v296
      %301 = vrot.lane.b32.xlu0 %v299, 48
      %v302 = vpop.permute.xlu0 %301
      %vm304 = vcmask 123904
      %305 = vst.msk [vmem:[#allocation2 + $0x2] sm:$0x3] %vm304, %v302
      %v306 = vld [vmem:[%s192] sm:$0xf]
      %v307 = vpack.c.bf16 %v306, %v306
      %v309 = vrot.slane %v307, 2
      %v312 = vsel %vm199, %v307, %v309
      %314 = vrot.lane.b32.xlu0 %v312, 50
      %v315 = vpop.permute.xlu0 %314
      %vm317 = vcmask 271504
      %318 = vst.msk [vmem:[#allocation2 + $0x2] sm:$0x3] %vm317, %v315
      %v319 = vld [vmem:[%s192] sm:$0xf]
      %v320 = vpack.c.bf16 %v319, %v319
      %v322 = vrot.slane %v320, 2
      %v325 = vsel %vm199, %v320, %v322
      %327 = vrot.lane.b32.xlu0 %v325, 52
      %v328 = vpop.permute.xlu0 %327
      %vm330 = vcmask 419104
      %331 = vst.msk [vmem:[#allocation2 + $0x2] sm:$0x3] %vm330, %v328
      %v332 = vld [vmem:[%s192 + $0x4] sm:$0xf]
      %v333 = vpack.c.bf16 %v332, %v332
      %v335 = vrot.slane %v333, 2
      %v338 = vsel %vm199, %v333, %v335
      %340 = vrot.lane.b32.xlu0 %v338, 54
      %v341 = vpop.permute.xlu0 %340
      %vm343 = vcmask 566704
      %344 = vst.msk [vmem:[#allocation2 + $0x2] sm:$0x3] %vm343, %v341
      %v345 = vld [vmem:[%s192 + $0x4] sm:$0xf]
      %v346 = vpack.c.bf16 %v345, %v345
      %v348 = vrot.slane %v346, 2
      %v351 = vsel %vm199, %v346, %v348
      %353 = vrot.lane.b32.xlu0 %v351, 56
      %v354 = vpop.permute.xlu0 %353
      %vm356 = vcmask 714304
      %357 = vst.msk [vmem:[#allocation2 + $0x2] sm:$0x3] %vm356, %v354
      %v358 = vld [vmem:[%s192 + $0x4] sm:$0xf]
      %v359 = vpack.c.bf16 %v358, %v358
      %v361 = vrot.slane %v359, 2
      %v364 = vsel %vm199, %v359, %v361
      %366 = vrot.lane.b32.xlu0 %v364, 58
      %v367 = vpop.permute.xlu0 %366
      %vm369 = vcmask 861904
      %370 = vst.msk [vmem:[#allocation2 + $0x2] sm:$0x3] %vm369, %v367
      %v371 = vld [vmem:[%s192 + $0x4] sm:$0xf]
      %v372 = vpack.c.bf16 %v371, %v371
      %v374 = vrot.slane %v372, 2
      %v377 = vsel %vm199, %v372, %v374
      %379 = vrot.lane.b32.xlu0 %v377, 60
      %v380 = vpop.permute.xlu0 %379
      %vm382 = vcmask 1009504
      %383 = vst.msk [vmem:[#allocation2 + $0x2] sm:$0x3] %vm382, %v380
      %v384 = vld [vmem:[%s192 + $0x4] sm:$0xf]
      %v385 = vpack.c.bf16 %v384, %v384
      %v387 = vrot.slane %v385, 2
      %v390 = vsel %vm199, %v385, %v387
      %392 = vrot.lane.b32.xlu0 %v390, 62
      %v393 = vpop.permute.xlu0 %392
      %v394 = vrot.slane %v393, 6
      %vm395 = vcmask 506880
      %v396 = vsel %vm395, %v394, %v393
      %vm398 = vcmask 1042416
      %vm399 = vcmask 109570
      %vm400 = vmor %vm399, %vm398
      %401 = vst.msk [vmem:[#allocation2 + $0x2] sm:$0xf] %vm400, %v396
      %v402 = vld [vmem:[%s192 + $0x4] sm:$0xf]
      %v403 = vpack.c.bf16 %v402, %v402
      %v405 = vrot.slane %v403, 2
      %v408 = vsel %vm199, %v403, %v405
      %410 = vrot.lane.b32.xlu0 %v408, 64
      %v411 = vpop.permute.xlu0 %410
      %vm413 = vcmask 255104
      %414 = vst.msk [vmem:[#allocation2 + $0x4] sm:$0x3] %vm413, %v411
      %v415 = vld [vmem:[%s192 + $0x4] sm:$0xf]
      %v416 = vpack.c.bf16 %v415, %v415
      %v418 = vrot.slane %v416, 2
      %v421 = vsel %vm199, %v416, %v418
      %423 = vrot.lane.b32.xlu0 %v421, 66
      %v424 = vpop.permute.xlu0 %423
      %vm426 = vcmask 402704
      %427 = vst.msk [vmem:[#allocation2 + $0x4] sm:$0x3] %vm426, %v424
      %v428 = vld [vmem:[%s192 + $0x4] sm:$0xf]
      %v429 = vpack.c.bf16 %v428, %v428
      %v431 = vrot.slane %v429, 2
      %v434 = vsel %vm199, %v429, %v431
      %436 = vrot.lane.b32.xlu0 %v434, 68
      %v437 = vpop.permute.xlu0 %436
      %vm439 = vcmask 550304
      %440 = vst.msk [vmem:[#allocation2 + $0x4] sm:$0x3] %vm439, %v437
      %v441 = vld [vmem:[#allocation2] sm:$0x3f]
      %443 = vst [vmem:[#allocation1] ss:$2 sm:$0xff] %v441
      %v444 = vld.sshfl [vmem:[#allocation1] sm:$0xff pattern:$0x75643120]
      %v445 = vld.sshfl [vmem:[#allocation1 + $0x8] sm:$0xff pattern:$0x75643120]
      %448 = vst [vmem:[#allocation4] sm:$0x33] %v444
      %vm449 = vcmask 549888
      %450 = vst.msk [vmem:[#allocation4 + $0x8] sm:$0x3] %vm449, %v445
      %v451 = vld [vmem:[#allocation2] sm:$0x3f]
      %453 = vst [vmem:[#allocation1] ss:$2 sm:$0xff] %v451
      %v454 = vld.sshfl [vmem:[#allocation1] sm:$0xff pattern:$0x75643120]
      %v456 = vld.sshfl [vmem:[#allocation1 + $0x8] sm:$0xff pattern:$0x75643120]
      %458 = vrot.lane.b32.xlu0 %v454, 127
      %v459 = vpop.permute.xlu0 %458
      %460 = vrot.lane.b32.xlu0 %v456, 127
      %v461 = vpop.permute.xlu0 %460
      %v462 = vrot.slane %v459, 4
      %v463 = vrot.slane %v461, 4
      %vm464 = vcmask 1043456
      %v465 = vsel %vm464, %v462, %v463
      %vm466 = vcmask 1039360
      %v467 = vsel %vm466, %v459, %v465
      %470 = vst [vmem:[#allocation4 + $0xc] sm:$0x33] %v467
      %471 = vst.msk [vmem:[#allocation4 + $0x14] sm:$0x3] %vm449, %v461
      %v472 = vld [vmem:[#allocation2] sm:$0x3f]
      %474 = vst [vmem:[#allocation1] ss:$2 sm:$0xff] %v472
      %v475 = vld.sshfl [vmem:[#allocation1] sm:$0xff pattern:$0x75643120]
      %v477 = vld.sshfl [vmem:[#allocation1 + $0x8] sm:$0xff pattern:$0x75643120]
      %479 = vrot.lane.b32.xlu0 %v475, 126
      %v480 = vpop.permute.xlu0 %479
      %481 = vrot.lane.b32.xlu0 %v477, 126
      %v482 = vpop.permute.xlu0 %481
      %v483 = vrot.slane %v480, 4
      %v484 = vrot.slane %v482, 4
      %v485 = vsel %vm464, %v483, %v484
      %vm486 = vcmask 1031168
      %v487 = vsel %vm486, %v480, %v485
      %490 = vst [vmem:[#allocation4 + $0x18] sm:$0x33] %v487
      %491 = vst.msk [vmem:[#allocation4 + $0x20] sm:$0x3] %vm449, %v482
      %v492 = vld [vmem:[#allocation2] sm:$0x3f]
      %494 = vst [vmem:[#allocation1] ss:$2 sm:$0xff] %v492
      %v495 = vld.sshfl [vmem:[#allocation1] sm:$0xff pattern:$0x75643120]
      %v497 = vld.sshfl [vmem:[#allocation1 + $0x8] sm:$0xff pattern:$0x75643120]
      %499 = vrot.lane.b32.xlu0 %v495, 110
      %v500 = vpop.permute.xlu0 %499
      %501 = vrot.lane.b32.xlu0 %v497, 110
      %v502 = vpop.permute.xlu0 %501
      %v503 = vrot.slane %v500, 4
      %v504 = vrot.slane %v502, 4
      %v505 = vsel %vm464, %v503, %v504
      %vm506 = vcmask 900096
      %v507 = vsel %vm506, %v500, %v505
      %510 = vst [vmem:[#allocation4 + $0x24] sm:$0x33] %v507
      %511 = vst.msk [vmem:[#allocation4 + $0x2c] sm:$0x3] %vm449, %v502
      %v512 = vld [vmem:[#allocation2] sm:$0x3f]
      %514 = vst [vmem:[#allocation1] ss:$2 sm:$0xff] %v512
      %v515 = vld.sshfl [vmem:[#allocation1] sm:$0xff pattern:$0x75643120]
      %v517 = vld.sshfl [vmem:[#allocation1 + $0x8] sm:$0xff pattern:$0x75643120]
      %519 = vrot.lane.b32.xlu0 %v515, 109
      %v520 = vpop.permute.xlu0 %519
      %521 = vrot.lane.b32.xlu0 %v517, 109
      %v522 = vpop.permute.xlu0 %521
      %v523 = vrot.slane %v520, 4
      %v524 = vrot.slane %v522, 4
      %v525 = vsel %vm464, %v523, %v524
      %vm526 = vcmask 891904
      %v527 = vsel %vm526, %v520, %v525
      %530 = vst [vmem:[#allocation4 + $0x30] sm:$0x33] %v527
      %531 = vst.msk [vmem:[#allocation4 + $0x38] sm:$0x3] %vm449, %v522
      %v532 = vld [vmem:[#allocation2] sm:$0x3f]
      %534 = vst [vmem:[#allocation1] ss:$2 sm:$0xff] %v532
      %v535 = vld.sshfl [vmem:[#allocation1] sm:$0xff pattern:$0x75643120]
      %v537 = vld.sshfl [vmem:[#allocation1 + $0x8] sm:$0xff pattern:$0x75643120]
      %539 = vrot.lane.b32.xlu0 %v535, 108
      %v540 = vpop.permute.xlu0 %539
      %541 = vrot.lane.b32.xlu0 %v537, 108
      %v542 = vpop.permute.xlu0 %541
      %v543 = vrot.slane %v540, 4
      %v544 = vrot.slane %v542, 4
      %v545 = vsel %vm464, %v543, %v544
      %vm546 = vcmask 883712
      %v547 = vsel %vm546, %v540, %v545
      %550 = vst [vmem:[#allocation4 + $0x3c] sm:$0x33] %v547
      %551 = vst.msk [vmem:[#allocation4 + $0x44] sm:$0x3] %vm449, %v542
      %v552 = vld [vmem:[#allocation2] sm:$0x3f]
      %554 = vst [vmem:[#allocation1] ss:$2 sm:$0xff] %v552
      %v555 = vld.sshfl [vmem:[#allocation1] sm:$0xff pattern:$0x75643120]
      %v557 = vld.sshfl [vmem:[#allocation1 + $0x8] sm:$0xff pattern:$0x75643120]
      %559 = vrot.lane.b32.xlu0 %v555, 92
      %v560 = vpop.permute.xlu0 %559
      %561 = vrot.lane.b32.xlu0 %v557, 92
      %v562 = vpop.permute.xlu0 %561
      %v563 = vrot.slane %v560, 4
      %v564 = vrot.slane %v562, 4
      %v565 = vsel %vm464, %v563, %v564
      %vm566 = vcmask 752640
      %v567 = vsel %vm566, %v560, %v565
      %570 = vst [vmem:[#allocation4 + $0x48] sm:$0x33] %v567
      %571 = vst.msk [vmem:[#allocation4 + $0x50] sm:$0x3] %vm449, %v562
      %v572 = vld [vmem:[#allocation2] sm:$0x3f]
      %574 = vst [vmem:[#allocation1] ss:$2 sm:$0xff] %v572
      %v575 = vld.sshfl [vmem:[#allocation1] sm:$0xff pattern:$0x75643120]
      %v577 = vld.sshfl [vmem:[#allocation1 + $0x8] sm:$0xff pattern:$0x75643120]
      %579 = vrot.lane.b32.xlu0 %v575, 91
      %v580 = vpop.permute.xlu0 %579
      %581 = vrot.lane.b32.xlu0 %v577, 91
      %v582 = vpop.permute.xlu0 %581
      %v583 = vrot.slane %v580, 4
      %v584 = vrot.slane %v582, 4
      %v585 = vsel %vm464, %v583, %v584
      %vm586 = vcmask 744448
      %v587 = vsel %vm586, %v580, %v585
      %590 = vst [vmem:[#allocation4 + $0x54] sm:$0x33] %v587
      %591 = vst.msk [vmem:[#allocation4 + $0x5c] sm:$0x3] %vm449, %v582
      %v592 = vld [vmem:[#allocation2] sm:$0x3f]
      %594 = vst [vmem:[#allocation1] ss:$2 sm:$0xff] %v592
      %v595 = vld.sshfl [vmem:[#allocation1] sm:$0xff pattern:$0x75643120]
      %v597 = vld.sshfl [vmem:[#allocation1 + $0x8] sm:$0xff pattern:$0x75643120]
      %599 = vrot.lane.b32.xlu0 %v595, 90
      %v600 = vpop.permute.xlu0 %599
      %601 = vrot.lane.b32.xlu0 %v597, 90
      %v602 = vpop.permute.xlu0 %601
      %v603 = vrot.slane %v600, 4
      %v604 = vrot.slane %v602, 4
      %v605 = vsel %vm464, %v603, %v604
      %vm606 = vcmask 736256
      %v607 = vsel %vm606, %v600, %v605
      %610 = vst [vmem:[#allocation4 + $0x60] sm:$0x33] %v607
      %611 = vst.msk [vmem:[#allocation4 + $0x68] sm:$0x3] %vm449, %v602
      %v612 = vld [vmem:[%s1] sm:$0x3]
      %v613 = vld [vmem:[#allocation4] sm:$0xff]
      %v614 = vld [vmem:[#allocation4 + $0x8] sm:$0xf]
      %v615 = vld [vmem:[#allocation4 + $0xc] sm:$0xff]
      %v616 = vld [vmem:[#allocation4 + $0x14] sm:$0xf]
      %v617 = vld [vmem:[#allocation4 + $0x18] sm:$0xff]
      %v618 = vld [vmem:[#allocation4 + $0x20] sm:$0xf]
      %v619 = vld [vmem:[#allocation4 + $0x24] sm:$0xff]
      %v620 = vld [vmem:[#allocation4 + $0x2c] sm:$0xf]
      %v621 = vld [vmem:[#allocation4 + $0x30] sm:$0xff]
      %v622 = vld [vmem:[#allocation4 + $0x38] sm:$0xf]
      %v623 = vld [vmem:[#allocation4 + $0x3c] sm:$0xff]
      %v624 = vld [vmem:[#allocation4 + $0x44] sm:$0xf]
      %v625 = vld [vmem:[#allocation4 + $0x48] sm:$0xff]
      %v626 = vld [vmem:[#allocation4 + $0x50] sm:$0xf]
      %v627 = vld [vmem:[#allocation4 + $0x54] sm:$0xff]
      %v628 = vld [vmem:[#allocation4 + $0x5c] sm:$0xf]
      %v629 = vld [vmem:[#allocation4 + $0x60] sm:$0xff]
      %v630 = vld [vmem:[#allocation4 + $0x68] sm:$0xf]
      %v649 = vunpack.c.l.b16 %v613
      %v650 = vunpack.c.h.b16 %v613
      %v651 = vunpack.c.l.b16 %v614
      %v652 = vunpack.c.l.b16 %v615
      %v653 = vunpack.c.h.b16 %v615
      %v654 = vunpack.c.l.b16 %v616
      %v655 = vunpack.c.l.b16 %v617
      %v656 = vunpack.c.h.b16 %v617
      %v657 = vunpack.c.l.b16 %v618
      %v658 = vunpack.c.l.b16 %v619
      %v659 = vunpack.c.h.b16 %v619
      %v660 = vunpack.c.l.b16 %v620
      %v661 = vunpack.c.l.b16 %v621
      %v662 = vunpack.c.h.b16 %v621
      %v663 = vunpack.c.l.b16 %v622
      %v664 = vunpack.c.l.b16 %v623
      %v665 = vunpack.c.h.b16 %v623
      %v666 = vunpack.c.l.b16 %v624
      %v667 = vunpack.c.l.b16 %v625
      %v668 = vunpack.c.h.b16 %v625
      %v669 = vunpack.c.l.b16 %v626
      %v670 = vunpack.c.l.b16 %v627
      %v671 = vunpack.c.h.b16 %v627
      %v672 = vunpack.c.l.b16 %v628
      %v673 = vunpack.c.l.b16 %v629
      %v674 = vunpack.c.h.b16 %v629
      %v675 = vunpack.c.l.b16 %v630
      %v676 = vpack.c.b16 %v652, %v649
      %v677 = vpack.c.b16 %v653, %v650
      %v678 = vpack.c.b16 %v654, %v651
      %v679 = vpack.c.b16 %v658, %v655
      %v680 = vpack.c.b16 %v659, %v656
      %v681 = vpack.c.b16 %v660, %v657
      %v682 = vpack.c.b16 %v664, %v661
      %v683 = vpack.c.b16 %v665, %v662
      %v684 = vpack.c.b16 %v666, %v663
      %v685 = vpack.c.b16 %v670, %v667
      %v686 = vpack.c.b16 %v671, %v668
      %v687 = vpack.c.b16 %v672, %v669
      %v688 = vpack.c.b16 %v673, %v673
      %v689 = vpack.c.b16 %v674, %v674
      %v690 = vpack.c.b16 %v675, %v675
      %vm703 = vcmask 588800
      %v705 = vsel %vm703, %v612, 0
      %vm707 = vcmask 1043456
      %v709 = vsel %vm707, %v688, 0
      %v712 = vsel %vm707, %v689, 0
      %v715 = vsel %vm707, %v690, 0
      %717 = vmatpush.bf16.msra.mxu0 0
      %718 = vmatpush.bf16.msra.mxu0 0
      %719 = vmatpush.bf16.msra.mxu0 0
      %720 = vmatpush.bf16.msra.mxu0 %v709
      %721 = vmatpush.bf16.msra.mxu0 %v685
      %722 = vmatpush.bf16.msra.mxu0 %v682
      %723 = vmatpush.bf16.msra.mxu0 %v679
      %724 = vmatpush.bf16.msra.mxu0 %v676
      %725 = vmatmul.bf16.gmra.mxu0 %v705
      %v726 = vpop.f32.mrf.mxu0
      %v727 = vadd.f32 0.0, %v726
      %v728 = vpop.f32.mrf.mxu0
      %729 = vdwg.mxu0
      %730 = vmatpush.bf16.msra.mxu0 0
      %731 = vmatpush.bf16.msra.mxu0 0
      %732 = vmatpush.bf16.msra.mxu0 0
      %733 = vmatpush.bf16.msra.mxu0 %v712
      %734 = vmatpush.bf16.msra.mxu0 %v686
      %735 = vmatpush.bf16.msra.mxu0 %v683
      %736 = vmatpush.bf16.msra.mxu0 %v680
      %737 = vmatpush.bf16.msra.mxu0 %v677
      %738 = vmatmul.bf16.gmra.mxu0 %v705
      %v739 = vpop.f32.mrf.mxu0
      %v740 = vadd.f32 0.0, %v739
      %v741 = vpop.f32.mrf.mxu0
      %742 = vdwg.mxu0
      %743 = vmatpush.bf16.msra.mxu0 0
      %744 = vmatpush.bf16.msra.mxu0 0
      %745 = vmatpush.bf16.msra.mxu0 0
      %746 = vmatpush.bf16.msra.mxu0 %v715
      %747 = vmatpush.bf16.msra.mxu0 %v687
      %748 = vmatpush.bf16.msra.mxu0 %v684
      %749 = vmatpush.bf16.msra.mxu0 %v681
      %750 = vmatpush.bf16.msra.mxu0 %v678
      %751 = vmatmul.bf16.gmra.mxu0 %v705
      %v752 = vpop.f32.mrf.mxu0
      %v753 = vadd.f32 0.0, %v752
      %v754 = vpop.f32.mrf.mxu0
      %755 = vdwg.mxu0
      %v756 = vld [vmem:[%s2] sm:$0xf]
      %758 = vset.pattern.permute.xlu0 0
      %759 = vperm.xlu0 %758, %v756
      %v760 = vpop.permute.xlu0 %759
      %v762 = vmul.f32 %v727, %v760
      %v763 = vmul.f32 %v740, %v760
      %v764 = vmul.f32 %v753, %v760
      %765 = vset.pattern.permute.xlu0 1
      %766 = vperm.xlu0 %765, %v756
      %v767 = vpop.permute.xlu0 %766
      %v769 = vadd.f32 %v762, %v767
      %v770 = vadd.f32 %v763, %v767
      %v771 = vadd.f32 %v764, %v767
      %v772 = vmax.f32 %v769, 0.0
      %v773 = vmax.f32 %v770, 0.0
      %v774 = vmax.f32 %v771, 0.0
      %v775 = vld [vmem:[%s3] sm:$0x7]
      %v777 = vperm.slane %v775, 0
      %v778 = vperm.slane %v775, 1
      %v779 = vperm.slane %v775, 2
      %v783 = vmul.f32 %v772, %v777
      %v784 = vmul.f32 %v773, %v778
      %v785 = vmul.f32 %v774, %v779
      %v786 = vpack.c.bf16 %v784, %v783
      %v787 = vpack.c.bf16 %v785, %v785
      %v790 = vrot.slane %v786, 2
      %v791 = vrot.slane %v787, 4
      %v792 = vrot.slane %v787, 6
      %v795 = vsel %vm199, %v786, %v790
      %vm796 = vcmask 1045508
      %v799 = vsel %vm796, %v791, %v792
      %v800 = vsel %vm707, %v795, %v799
      %802 = vrot.lane.b32.xlu0 %v800, 19
      %v803 = vpop.permute.xlu0 %802
      %v804 = vrot.slane %v803, 6
      %vm805 = vcmask 154624
      %v806 = vsel %vm805, %v804, %v803
      %vm808 = vcmask 1041560
      %vm809 = vmor %vm200, %vm808
      %vm810 = vcmask 709636
      %vm811 = vmor %vm810, %vm809
      %812 = vst.msk [vmem:[#allocation3] sm:$0x3f] %vm811, %v806
      %v813 = vld [vmem:[#allocation3] sm:$0x3f]
      %815 = vst [vmem:[#allocation1] ss:$2 sm:$0xff] %v813
      %v816 = vld.sshfl [vmem:[#allocation1] sm:$0xff pattern:$0x75643120]
      %v817 = vld.sshfl [vmem:[#allocation1 + $0x8] sm:$0xff pattern:$0x75643120]
      %820 = vst [vmem:[#allocation4] sm:$0x33] %v816
      %821 = vst.msk [vmem:[#allocation4 + $0x8] sm:$0x3] %vm449, %v817
      %v822 = vld [vmem:[#allocation3] sm:$0x3f]
      %824 = vst [vmem:[#allocation1] ss:$2 sm:$0xff] %v822
      %v825 = vld.sshfl [vmem:[#allocation1] sm:$0xff pattern:$0x75643120]
      %v827 = vld.sshfl [vmem:[#allocation1 + $0x8] sm:$0xff pattern:$0x75643120]
      %829 = vrot.lane.b32.xlu0 %v825, 127
      %v830 = vpop.permute.xlu0 %829
      %831 = vrot.lane.b32.xlu0 %v827, 127
      %v832 = vpop.permute.xlu0 %831
      %v833 = vrot.slane %v830, 4
      %v834 = vrot.slane %v832, 4
      %v835 = vsel %vm464, %v833, %v834
      %v836 = vsel %vm466, %v830, %v835
      %839 = vst [vmem:[#allocation4 + $0xc] sm:$0x33] %v836
      %840 = vst.msk [vmem:[#allocation4 + $0x14] sm:$0x3] %vm449, %v832
      %v841 = vld [vmem:[#allocation3] sm:$0x3f]
      %843 = vst [vmem:[#allocation1] ss:$2 sm:$0xff] %v841
      %v844 = vld.sshfl [vmem:[#allocation1] sm:$0xff pattern:$0x75643120]
      %v846 = vld.sshfl [vmem:[#allocation1 + $0x8] sm:$0xff pattern:$0x75643120]
      %848 = vrot.lane.b32.xlu0 %v844, 126
      %v849 = vpop.permute.xlu0 %848
      %850 = vrot.lane.b32.xlu0 %v846, 126
      %v851 = vpop.permute.xlu0 %850
      %v852 = vrot.slane %v849, 4
      %v853 = vrot.slane %v851, 4
      %v854 = vsel %vm464, %v852, %v853
      %v855 = vsel %vm486, %v849, %v854
      %858 = vst [vmem:[#allocation4 + $0x18] sm:$0x33] %v855
      %859 = vst.msk [vmem:[#allocation4 + $0x20] sm:$0x3] %vm449, %v851
      %v860 = vld [vmem:[#allocation3] sm:$0x3f]
      %862 = vst [vmem:[#allocation1] ss:$2 sm:$0xff] %v860
      %v863 = vld.sshfl [vmem:[#allocation1] sm:$0xff pattern:$0x75643120]
      %v865 = vld.sshfl [vmem:[#allocation1 + $0x8] sm:$0xff pattern:$0x75643120]
      %867 = vrot.lane.b32.xlu0 %v863, 110
      %v868 = vpop.permute.xlu0 %867
      %869 = vrot.lane.b32.xlu0 %v865, 110
      %v870 = vpop.permute.xlu0 %869
      %v871 = vrot.slane %v868, 4
      %v872 = vrot.slane %v870, 4
      %v873 = vsel %vm464, %v871, %v872
      %v874 = vsel %vm506, %v868, %v873
      %877 = vst [vmem:[#allocation4 + $0x24] sm:$0x33] %v874
      %878 = vst.msk [vmem:[#allocation4 + $0x2c] sm:$0x3] %vm449, %v870
      %v879 = vld [vmem:[#allocation3] sm:$0x3f]
      %881 = vst [vmem:[#allocation1] ss:$2 sm:$0xff] %v879
      %v882 = vld.sshfl [vmem:[#allocation1] sm:$0xff pattern:$0x75643120]
      %v884 = vld.sshfl [vmem:[#allocation1 + $0x8] sm:$0xff pattern:$0x75643120]
      %886 = vrot.lane.b32.xlu0 %v882, 109
      %v887 = vpop.permute.xlu0 %886
      %888 = vrot.lane.b32.xlu0 %v884, 109
      %v889 = vpop.permute.xlu0 %888
      %v890 = vrot.slane %v887, 4
      %v891 = vrot.slane %v889, 4
      %v892 = vsel %vm464, %v890, %v891
      %v893 = vsel %vm526, %v887, %v892
      %896 = vst [vmem:[#allocation4 + $0x30] sm:$0x33] %v893
      %897 = vst.msk [vmem:[#allocation4 + $0x38] sm:$0x3] %vm449, %v889
      %v898 = vld [vmem:[#allocation3] sm:$0x3f]
      %900 = vst [vmem:[#allocation1] ss:$2 sm:$0xff] %v898
      %v901 = vld.sshfl [vmem:[#allocation1] sm:$0xff pattern:$0x75643120]
      %v903 = vld.sshfl [vmem:[#allocation1 + $0x8] sm:$0xff pattern:$0x75643120]
      %905 = vrot.lane.b32.xlu0 %v901, 108
      %v906 = vpop.permute.xlu0 %905
      %907 = vrot.lane.b32.xlu0 %v903, 108
      %v908 = vpop.permute.xlu0 %907
      %v909 = vrot.slane %v906, 4
      %v910 = vrot.slane %v908, 4
      %v911 = vsel %vm464, %v909, %v910
      %v912 = vsel %vm546, %v906, %v911
      %915 = vst [vmem:[#allocation4 + $0x3c] sm:$0x33] %v912
      %916 = vst.msk [vmem:[#allocation4 + $0x44] sm:$0x3] %vm449, %v908
      %v917 = vld [vmem:[#allocation3] sm:$0x3f]
      %919 = vst [vmem:[#allocation1] ss:$2 sm:$0xff] %v917
      %v920 = vld.sshfl [vmem:[#allocation1] sm:$0xff pattern:$0x75643120]
      %v922 = vld.sshfl [vmem:[#allocation1 + $0x8] sm:$0xff pattern:$0x75643120]
      %924 = vrot.lane.b32.xlu0 %v920, 92
      %v925 = vpop.permute.xlu0 %924
      %926 = vrot.lane.b32.xlu0 %v922, 92
      %v927 = vpop.permute.xlu0 %926
      %v928 = vrot.slane %v925, 4
      %v929 = vrot.slane %v927, 4
      %v930 = vsel %vm464, %v928, %v929
      %v931 = vsel %vm566, %v925, %v930
      %934 = vst [vmem:[#allocation4 + $0x48] sm:$0x33] %v931
      %935 = vst.msk [vmem:[#allocation4 + $0x50] sm:$0x3] %vm449, %v927
      %v936 = vld [vmem:[#allocation3] sm:$0x3f]
      %938 = vst [vmem:[#allocation1] ss:$2 sm:$0xff] %v936
      %v939 = vld.sshfl [vmem:[#allocation1] sm:$0xff pattern:$0x75643120]
      %v941 = vld.sshfl [vmem:[#allocation1 + $0x8] sm:$0xff pattern:$0x75643120]
      %943 = vrot.lane.b32.xlu0 %v939, 91
      %v944 = vpop.permute.xlu0 %943
      %945 = vrot.lane.b32.xlu0 %v941, 91
      %v946 = vpop.permute.xlu0 %945
      %v947 = vrot.slane %v944, 4
      %v948 = vrot.slane %v946, 4
      %v949 = vsel %vm464, %v947, %v948
      %v950 = vsel %vm586, %v944, %v949
      %953 = vst [vmem:[#allocation4 + $0x54] sm:$0x33] %v950
      %954 = vst.msk [vmem:[#allocation4 + $0x5c] sm:$0x3] %vm449, %v946
      %v955 = vld [vmem:[#allocation3] sm:$0x3f]
      %957 = vst [vmem:[#allocation1] ss:$2 sm:$0xff] %v955
      %v958 = vld.sshfl [vmem:[#allocation1] sm:$0xff pattern:$0x75643120]
      %v960 = vld.sshfl [vmem:[#allocation1 + $0x8] sm:$0xff pattern:$0x75643120]
      %962 = vrot.lane.b32.xlu0 %v958, 90
      %v963 = vpop.permute.xlu0 %962
      %964 = vrot.lane.b32.xlu0 %v960, 90
      %v965 = vpop.permute.xlu0 %964
      %v966 = vrot.slane %v963, 4
      %v967 = vrot.slane %v965, 4
      %v968 = vsel %vm464, %v966, %v967
      %v969 = vsel %vm606, %v963, %v968
      %972 = vst [vmem:[#allocation4 + $0x60] sm:$0x33] %v969
      %973 = vst.msk [vmem:[#allocation4 + $0x68] sm:$0x3] %vm449, %v965
      %v974 = vld [vmem:[%s1] sm:$0xf]
      %v975 = vld [vmem:[#allocation4] sm:$0xff]
      %v976 = vld [vmem:[#allocation4 + $0x8] sm:$0xf]
      %v977 = vld [vmem:[#allocation4 + $0xc] sm:$0xff]
      %v978 = vld [vmem:[#allocation4 + $0x14] sm:$0xf]
      %v979 = vld [vmem:[#allocation4 + $0x18] sm:$0xff]
      %v980 = vld [vmem:[#allocation4 + $0x20] sm:$0xf]
      %v981 = vld [vmem:[#allocation4 + $0x24] sm:$0xff]
      %v982 = vld [vmem:[#allocation4 + $0x2c] sm:$0xf]
      %v983 = vld [vmem:[#allocation4 + $0x30] sm:$0xff]
      %v984 = vld [vmem:[#allocation4 + $0x38] sm:$0xf]
      %v985 = vld [vmem:[#allocation4 + $0x3c] sm:$0xff]
      %v986 = vld [vmem:[#allocation4 + $0x44] sm:$0xf]
      %v987 = vld [vmem:[#allocation4 + $0x48] sm:$0xff]
      %v988 = vld [vmem:[#allocation4 + $0x50] sm:$0xf]
      %v989 = vld [vmem:[#allocation4 + $0x54] sm:$0xff]
      %v990 = vld [vmem:[#allocation4 + $0x5c] sm:$0xf]
      %v991 = vld [vmem:[#allocation4 + $0x60] sm:$0xff]
      %v992 = vld [vmem:[#allocation4 + $0x68] sm:$0xf]
      %994 = vst [vmem:[#allocation1] ss:$4 sm:$0xff] %v974
      %v995 = vld.sshfl [vmem:[#allocation1] sm:$0xff pattern:$0x73625140]
      %v997 = vld.sshfl [vmem:[#allocation1 + $0x8] sm:$0xff pattern:$0x73625140]
      %999 = vrot.lane.b32.xlu0 %v995, 56
      %v1000 = vpop.permute.xlu0 %999
      %1001 = vrot.lane.b32.xlu0 %v997, 56
      %v1002 = vpop.permute.xlu0 %1001
      %vm1003 = vcmask 457728
      %v1004 = vsel %vm1003, %v1000, %v1002
      %v1023 = vunpack.c.l.b16 %v975
      %v1024 = vunpack.c.h.b16 %v975
      %v1025 = vunpack.c.l.b16 %v976
      %v1026 = vunpack.c.l.b16 %v977
      %v1027 = vunpack.c.h.b16 %v977
      %v1028 = vunpack.c.l.b16 %v978
      %v1029 = vunpack.c.l.b16 %v979
      %v1030 = vunpack.c.h.b16 %v979
      %v1031 = vunpack.c.l.b16 %v980
      %v1032 = vunpack.c.l.b16 %v981
      %v1033 = vunpack.c.h.b16 %v981
      %v1034 = vunpack.c.l.b16 %v982
      %v1035 = vunpack.c.l.b16 %v983
      %v1036 = vunpack.c.h.b16 %v983
      %v1037 = vunpack.c.l.b16 %v984
      %v1038 = vunpack.c.l.b16 %v985
      %v1039 = vunpack.c.h.b16 %v985
      %v1040 = vunpack.c.l.b16 %v986
      %v1041 = vunpack.c.l.b16 %v987
      %v1042 = vunpack.c.h.b16 %v987
      %v1043 = vunpack.c.l.b16 %v988
      %v1044 = vunpack.c.l.b16 %v989
      %v1045 = vunpack.c.h.b16 %v989
      %v1046 = vunpack.c.l.b16 %v990
      %v1047 = vunpack.c.l.b16 %v991
      %v1048 = vunpack.c.h.b16 %v991
      %v1049 = vunpack.c.l.b16 %v992
      %v1050 = vpack.c.b16 %v1026, %v1023
      %v1051 = vpack.c.b16 %v1027, %v1024
      %v1052 = vpack.c.b16 %v1028, %v1025
      %v1053 = vpack.c.b16 %v1032, %v1029
      %v1054 = vpack.c.b16 %v1033, %v1030
      %v1055 = vpack.c.b16 %v1034, %v1031
      %v1056 = vpack.c.b16 %v1038, %v1035
      %v1057 = vpack.c.b16 %v1039, %v1036
      %v1058 = vpack.c.b16 %v1040, %v1037
      %v1059 = vpack.c.b16 %v1044, %v1041
      %v1060 = vpack.c.b16 %v1045, %v1042
      %v1061 = vpack.c.b16 %v1046, %v1043
      %v1062 = vpack.c.b16 %v1047, %v1047
      %v1063 = vpack.c.b16 %v1048, %v1048
      %v1064 = vpack.c.b16 %v1049, %v1049
      %v1078 = vsel %vm703, %v1004, 0
      %v1081 = vsel %vm707, %v1062, 0
      %v1084 = vsel %vm707, %v1063, 0
      %v1087 = vsel %vm707, %v1064, 0
      %1089 = vmatpush.bf16.msra.mxu0 0
      %1090 = vmatpush.bf16.msra.mxu0 0
      %1091 = vmatpush.bf16.msra.mxu0 0
      %1092 = vmatpush.bf16.msra.mxu0 %v1081
      %1093 = vmatpush.bf16.msra.mxu0 %v1059
      %1094 = vmatpush.bf16.msra.mxu0 %v1056
      %1095 = vmatpush.bf16.msra.mxu0 %v1053
      %1096 = vmatpush.bf16.msra.mxu0 %v1050
      %1097 = vmatmul.bf16.gmra.mxu0 %v1078
      %v1098 = vpop.f32.mrf.mxu0
      %v1099 = vadd.f32 0.0, %v1098
      %v1100 = vpop.f32.mrf.mxu0
      %1101 = vdwg.mxu0
      %1102 = vmatpush.bf16.msra.mxu0 0
      %1103 = vmatpush.bf16.msra.mxu0 0
      %1104 = vmatpush.bf16.msra.mxu0 0
      %1105 = vmatpush.bf16.msra.mxu0 %v1084
      %1106 = vmatpush.bf16.msra.mxu0 %v1060
      %1107 = vmatpush.bf16.msra.mxu0 %v1057
      %1108 = vmatpush.bf16.msra.mxu0 %v1054
      %1109 = vmatpush.bf16.msra.mxu0 %v1051
      %1110 = vmatmul.bf16.gmra.mxu0 %v1078
      %v1111 = vpop.f32.mrf.mxu0
      %v1112 = vadd.f32 0.0, %v1111
      %v1113 = vpop.f32.mrf.mxu0
      %1114 = vdwg.mxu0
      %1115 = vmatpush.bf16.msra.mxu0 0
      %1116 = vmatpush.bf16.msra.mxu0 0
      %1117 = vmatpush.bf16.msra.mxu0 0
      %1118 = vmatpush.bf16.msra.mxu0 %v1087
      %1119 = vmatpush.bf16.msra.mxu0 %v1061
      %1120 = vmatpush.bf16.msra.mxu0 %v1058
      %1121 = vmatpush.bf16.msra.mxu0 %v1055
      %1122 = vmatpush.bf16.msra.mxu0 %v1052
      %1123 = vmatmul.bf16.gmra.mxu0 %v1078
      %v1124 = vpop.f32.mrf.mxu0
      %v1125 = vadd.f32 0.0, %v1124
      %v1126 = vpop.f32.mrf.mxu0
      %1127 = vdwg.mxu0
      %v1128 = vld [vmem:[%s2] sm:$0xf]
      %1130 = vset.pattern.permute.xlu0 2
      %1131 = vperm.xlu0 %1130, %v1128
      %v1132 = vpop.permute.xlu0 %1131
      %v1134 = vmul.f32 %v1099, %v1132
      %v1135 = vmul.f32 %v1112, %v1132
      %v1136 = vmul.f32 %v1125, %v1132
      %1137 = vset.pattern.permute.xlu0 3
      %1138 = vperm.xlu0 %1137, %v1128
      %v1139 = vpop.permute.xlu0 %1138
      %v1141 = vadd.f32 %v1134, %v1139
      %v1142 = vadd.f32 %v1135, %v1139
      %v1143 = vadd.f32 %v1136, %v1139
      %v1144 = vld [vmem:[%s192] sm:$0xf]
      %1146 = vst [vmem:[#allocation1] ss:$2 sm:$0xff] %v1144
      %v1147 = vld.sshfl [vmem:[#allocation1] sm:$0xff pattern:$0x75316420]
      %1148 = vrot.lane.b32.xlu0 %v1147, 19
      %v1149 = vpop.permute.xlu0 %1148
      %v1151 = vadd.f32 %v1141, %v1149
      %v1152 = vmax.f32 %v1151, 0.0
      %1154 = vrot.lane.b32.xlu0 %v1152, 109
      %v1155 = vpop.permute.xlu0 %1154
      %vm1157 = vcmask 125952
      %1158 = vst.msk [vmem:[%s197] sm:$0xf] %vm1157, %v1155
      %v1159 = vld [vmem:[%s192] sm:$0xf]
      %1161 = vst [vmem:[#allocation1] ss:$2 sm:$0xff] %v1159
      %v1162 = vld.sshfl [vmem:[#allocation1] sm:$0xff pattern:$0x75316420]
      %1163 = vrot.lane.b32.xlu0 %v1162, 21
      %v1164 = vpop.permute.xlu0 %1163
      %v1166 = vadd.f32 %v1141, %v1164
      %v1167 = vmax.f32 %v1166, 0.0
      %1169 = vrot.lane.b32.xlu0 %v1167, 107
      %v1170 = vpop.permute.xlu0 %1169
      %vm1172 = vcmask 257152
      %1173 = vst.msk [vmem:[%s197] sm:$0xf] %vm1172, %v1170
      %v1174 = vld [vmem:[%s192] sm:$0xf]
      %1176 = vst [vmem:[#allocation1] ss:$2 sm:$0xff] %v1174
      %v1177 = vld.sshfl [vmem:[#allocation1] sm:$0xff pattern:$0x75316420]
      %1178 = vrot.lane.b32.xlu0 %v1177, 23
      %v1179 = vpop.permute.xlu0 %1178
      %v1181 = vadd.f32 %v1141, %v1179
      %v1182 = vmax.f32 %v1181, 0.0
      %1184 = vrot.lane.b32.xlu0 %v1182, 105
      %v1185 = vpop.permute.xlu0 %1184
      %vm1187 = vcmask 388352
      %1188 = vst.msk [vmem:[%s197] sm:$0xf] %vm1187, %v1185
      %v1189 = vld [vmem:[%s192] sm:$0xf]
      %1191 = vst [vmem:[#allocation1] ss:$2 sm:$0xff] %v1189
      %v1192 = vld.sshfl [vmem:[#allocation1] sm:$0xff pattern:$0x75316420]
      %1193 = vrot.lane.b32.xlu0 %v1192, 25
      %v1194 = vpop.permute.xlu0 %1193
      %v1196 = vadd.f32 %v1141, %v1194
      %v1197 = vmax.f32 %v1196, 0.0
      %1199 = vrot.lane.b32.xlu0 %v1197, 103
      %v1200 = vpop.permute.xlu0 %1199
      %vm1202 = vcmask 519552
      %1203 = vst.msk [vmem:[%s197] sm:$0xf] %vm1202, %v1200
      %v1204 = vld [vmem:[%s192] sm:$0xf]
      %1206 = vst [vmem:[#allocation1] ss:$2 sm:$0xff] %v1204
      %v1207 = vld.sshfl [vmem:[#allocation1] sm:$0xff pattern:$0x75316420]
      %1208 = vrot.lane.b32.xlu0 %v1207, 27
      %v1209 = vpop.permute.xlu0 %1208
      %v1211 = vadd.f32 %v1141, %v1209
      %v1212 = vmax.f32 %v1211, 0.0
      %1214 = vrot.lane.b32.xlu0 %v1212, 101
      %v1215 = vpop.permute.xlu0 %1214
      %vm1217 = vcmask 650752
      %1218 = vst.msk [vmem:[%s197] sm:$0xf] %vm1217, %v1215
      %v1219 = vld [vmem:[%s192] sm:$0xf]
      %1221 = vst [vmem:[#allocation1] ss:$2 sm:$0xff] %v1219
      %v1222 = vld.sshfl [vmem:[#allocation1] sm:$0xff pattern:$0x75316420]
      %1223 = vrot.lane.b32.xlu0 %v1222, 29
      %v1224 = vpop.permute.xlu0 %1223
      %v1226 = vadd.f32 %v1141, %v1224
      %v1227 = vmax.f32 %v1226, 0.0
      %1229 = vrot.lane.b32.xlu0 %v1227, 99
      %v1230 = vpop.permute.xlu0 %1229
      %vm1232 = vcmask 781952
      %1233 = vst.msk [vmem:[%s197] sm:$0xf] %vm1232, %v1230
      %v1234 = vld [vmem:[%s192] sm:$0xf]
      %1236 = vst [vmem:[#allocation1] ss:$2 sm:$0xff] %v1234
      %v1237 = vld.sshfl [vmem:[#allocation1] sm:$0xff pattern:$0x75316420]
      %1238 = vrot.lane.b32.xlu0 %v1237, 31
      %v1239 = vpop.permute.xlu0 %1238
      %v1241 = vadd.f32 %v1141, %v1239
      %v1242 = vadd.f32 %v1142, %v1239
      %v1243 = vmax.f32 %v1241, 0.0
      %v1244 = vmax.f32 %v1242, 0.0
      %v1247 = vrot.slane %v1244, 4
      %v1248 = vsel %vm707, %v1243, %v1247
      %1249 = vrot.lane.b32.xlu0 %v1248, 97
      %v1250 = vpop.permute.xlu0 %1249
      %v1251 = vrot.slane %v1250, 4
      %vm1252 = vcmask 793600
      %v1253 = vsel %vm1252, %v1250, %v1251
      %vm1255 = vcmask 913152
      %1256 = vst.msk [vmem:[%s197] sm:$0xf] %vm1255, %v1253
      %v1257 = vld [vmem:[%s192] sm:$0xf]
      %1259 = vst [vmem:[#allocation1] ss:$2 sm:$0xff] %v1257
      %v1260 = vld.sshfl [vmem:[#allocation1] sm:$0xff pattern:$0x75316420]
      %1261 = vrot.lane.b32.xlu0 %v1260, 33
      %v1262 = vpop.permute.xlu0 %1261
      %v1264 = vadd.f32 %v1142, %v1262
      %v1265 = vmax.f32 %v1264, 0.0
      %1267 = vrot.lane.b32.xlu0 %v1265, 95
      %v1268 = vpop.permute.xlu0 %1267
      %vm1270 = vcmask 1044352
      %1271 = vst.msk [vmem:[%s197] sm:$0xf] %vm1270, %v1268
      %v1272 = vld [vmem:[%s192 + $0x4] sm:$0xf]
      %1274 = vst [vmem:[#allocation1] ss:$2 sm:$0xff] %v1272
      %v1275 = vld.sshfl [vmem:[#allocation1] sm:$0xff pattern:$0x75316420]
      %1276 = vrot.lane.b32.xlu0 %v1275, 35
      %v1277 = vpop.permute.xlu0 %1276
      %v1279 = vadd.f32 %v1142, %v1277
      %v1280 = vmax.f32 %v1279, 0.0
      %1282 = vrot.lane.b32.xlu0 %v1280, 93
      %v1283 = vpop.permute.xlu0 %1282
      %1285 = vst.msk [vmem:[%s197 + $0x4] sm:$0xf] %vm1157, %v1283
      %v1286 = vld [vmem:[%s192 + $0x4] sm:$0xf]
      %1288 = vst [vmem:[#allocation1] ss:$2 sm:$0xff] %v1286
      %v1289 = vld.sshfl [vmem:[#allocation1] sm:$0xff pattern:$0x75316420]
      %1290 = vrot.lane.b32.xlu0 %v1289, 37
      %v1291 = vpop.permute.xlu0 %1290
      %v1293 = vadd.f32 %v1142, %v1291
      %v1294 = vmax.f32 %v1293, 0.0
      %1296 = vrot.lane.b32.xlu0 %v1294, 91
      %v1297 = vpop.permute.xlu0 %1296
      %1299 = vst.msk [vmem:[%s197 + $0x4] sm:$0xf] %vm1172, %v1297
      %v1300 = vld [vmem:[%s192 + $0x4] sm:$0xf]
      %1302 = vst [vmem:[#allocation1] ss:$2 sm:$0xff] %v1300
      %v1303 = vld.sshfl [vmem:[#allocation1] sm:$0xff pattern:$0x75316420]
      %1304 = vrot.lane.b32.xlu0 %v1303, 39
      %v1305 = vpop.permute.xlu0 %1304
      %v1307 = vadd.f32 %v1142, %v1305
      %v1308 = vmax.f32 %v1307, 0.0
      %1310 = vrot.lane.b32.xlu0 %v1308, 89
      %v1311 = vpop.permute.xlu0 %1310
      %1313 = vst.msk [vmem:[%s197 + $0x4] sm:$0xf] %vm1187, %v1311
      %v1314 = vld [vmem:[%s192 + $0x4] sm:$0xf]
      %1316 = vst [vmem:[#allocation1] ss:$2 sm:$0xff] %v1314
      %v1317 = vld.sshfl [vmem:[#allocation1] sm:$0xff pattern:$0x75316420]
      %1318 = vrot.lane.b32.xlu0 %v1317, 41
      %v1319 = vpop.permute.xlu0 %1318
      %v1321 = vadd.f32 %v1142, %v1319
      %v1322 = vmax.f32 %v1321, 0.0
      %1324 = vrot.lane.b32.xlu0 %v1322, 87
      %v1325 = vpop.permute.xlu0 %1324
      %1327 = vst.msk [vmem:[%s197 + $0x4] sm:$0xf] %vm1202, %v1325
      %v1328 = vld [vmem:[%s192 + $0x4] sm:$0xf]
      %1330 = vst [vmem:[#allocation1] ss:$2 sm:$0xff] %v1328
      %v1331 = vld.sshfl [vmem:[#allocation1] sm:$0xff pattern:$0x75316420]
      %1332 = vrot.lane.b32.xlu0 %v1331, 43
      %v1333 = vpop.permute.xlu0 %1332
      %v1335 = vadd.f32 %v1142, %v1333
      %v1336 = vmax.f32 %v1335, 0.0
      %1338 = vrot.lane.b32.xlu0 %v1336, 85
      %v1339 = vpop.permute.xlu0 %1338
      %1341 = vst.msk [vmem:[%s197 + $0x4] sm:$0xf] %vm1217, %v1339
      %v1342 = vld [vmem:[%s192 + $0x4] sm:$0xf]
      %1344 = vst [vmem:[#allocation1] ss:$2 sm:$0xff] %v1342
      %v1345 = vld.sshfl [vmem:[#allocation1] sm:$0xff pattern:$0x75316420]
      %1346 = vrot.lane.b32.xlu0 %v1345, 45
      %v1347 = vpop.permute.xlu0 %1346
      %v1349 = vadd.f32 %v1142, %v1347
      %v1350 = vadd.f32 %v1143, %v1347
      %v1351 = vmax.f32 %v1349, 0.0
      %v1352 = vmax.f32 %v1350, 0.0
      %v1355 = vrot.slane %v1352, 4
      %v1356 = vsel %vm707, %v1351, %v1355
      %1357 = vrot.lane.b32.xlu0 %v1356, 83
      %v1358 = vpop.permute.xlu0 %1357
      %v1359 = vrot.slane %v1358, 4
      %vm1360 = vcmask 678912
      %v1361 = vsel %vm1360, %v1358, %v1359
      %1363 = vst.msk [vmem:[%s197 + $0x4] sm:$0xf] %vm1232, %v1361
      %v1364 = vld [vmem:[%s192 + $0x4] sm:$0xf]
      %1366 = vst [vmem:[#allocation1] ss:$2 sm:$0xff] %v1364
      %v1367 = vld.sshfl [vmem:[#allocation1] sm:$0xff pattern:$0x75316420]
      %1368 = vrot.lane.b32.xlu0 %v1367, 47
      %v1369 = vpop.permute.xlu0 %1368
      %v1371 = vadd.f32 %v1143, %v1369
      %v1372 = vmax.f32 %v1371, 0.0
      %1374 = vrot.lane.b32.xlu0 %v1372, 81
      %v1375 = vpop.permute.xlu0 %1374
      %1377 = vst.msk [vmem:[%s197 + $0x4] sm:$0xf] %vm1255, %v1375
      %v1378 = vld [vmem:[%s192 + $0x4] sm:$0xf]
      %1380 = vst [vmem:[#allocation1] ss:$2 sm:$0xff] %v1378
      %v1381 = vld.sshfl [vmem:[#allocation1] sm:$0xff pattern:$0x75316420]
      %1382 = vrot.lane.b32.xlu0 %v1381, 49
      %v1383 = vpop.permute.xlu0 %1382
      %v1385 = vadd.f32 %v1143, %v1383
      %v1386 = vmax.f32 %v1385, 0.0
      %1388 = vrot.lane.b32.xlu0 %v1386, 79
      %v1389 = vpop.permute.xlu0 %1388
      %1391 = vst.msk [vmem:[%s197 + $0x4] sm:$0xf] %vm1270, %v1389
      %p1392 = scmp.lt.s32.totalorder %s15, 1
      %s1393 = scalar_select %p1392, %s15, 1
      %s1394 = smul.addr %s1393, 2
      %s1395 = smul.addr %s1394, 4
      %s1396 = scalar_lea.vmem %s4, %s1395
      // Predicated region
      $region37: #{basic_block_forward.1} parent=35 // pred_check
        %p1397 = pneg %p122
      $region38: #{basic_block_forward.1} parent=35 // pred_check_branch
        %1399 = sbr.rel (%p1397) target = $region40
      $region39: #{basic_block_forward.1} parent=35 // pred_region
        _
      $region40: #{basic_block_forward.1} parent=35 // pred_fallthru
        _
    $region36: #{basic_block_forward.1} parent=5 // pred_fallthru
      _
    %p1400 = scmp.le.s32.totalorder 2, %s10
    // Predicated region
    $region41: #{basic_block_forward.1} parent=5 // pred_check
      %p1401 = pneg %p1400
    $region42: #{basic_block_forward.1} parent=5 // pred_check_branch
      %1403 = sbr.rel (%p1401) target = $region44
    $region43: #{basic_block_forward.1} parent=5 // pred_region
      %s1404 = ssub.s32 %s10, 2
      // Predicated region
      $region45: #{basic_block_forward.1} parent=43 // pred_check
        %p1405 = pneg %p128
      $region46: #{basic_block_forward.1} parent=43 // pred_check_branch
        %1407 = sbr.rel (%p1405) target = $region48
      $region47: #{basic_block_forward.1} parent=43 // pred_region
        %p1408 = scmp.lt.s32.totalorder %s16, 1
        %s1409 = scalar_select %p1408, %s16, 1
        %s1410 = smul.addr %s1409, 2
        %s1411 = smul.addr %s1410, 4
        %s1412 = scalar_lea.vmem %s4, %s1411
      $region48: #{basic_block_forward.1} parent=43 // pred_fallthru
        _
    $region44: #{basic_block_forward.1} parent=5 // pred_fallthru
      _
  $region6: #{basic_block_forward.1} parent=0 // loop_footer
    %s14 = sadd.s32 1, %s10
  $region7: #{basic_block_forward.1} parent=0 // loop_footer_branch
    %9 = sbr.rel target = $region3
  $region8: #{basic_block_forward.1} parent=0 // loop_exit
    _

</llo_original>
